<compile_context>
chip_gen: v7x
topology: tpu7x:2x2x1
jax: 0.10.0
libtpu: 0.0.40
codegen_flags: <defaults>
</compile_context>

<pallas_src>
import functools

import jax
import jax.numpy as jnp
from jax.experimental import pallas as pl
from jax.experimental.pallas import tpu as pltpu


_MAX_HW_TILE = 4096   # caps per-grid-step latency / keeps a few pipeline steps


def _round_up(x, m):
    return ((x + m - 1) // m) * m


def _cdiv(a, b):
    return -(-a // b)


def _sublane_multiple(dtype):
    # Native sublane packing: f32 -> 8 rows/vreg, bf16 -> 16, int8/fp8 -> 32.
    return {4: 8, 2: 16, 1: 32}.get(jnp.dtype(dtype).itemsize, 8)


def _vmem_capacity_bytes():
    """Physical VMEM per TensorCore; conservative 64 MiB (v7x) if unknown."""
    try:
        cap = int(pltpu.get_tpu_info().vmem_capacity_bytes)
        if cap > 0:
            return cap
    except Exception:
        pass
    return 64 * 1024 * 1024


def _pick_hw_tile(T, C_in, C_out_p, k, HW, B, in_isz, out_isz, sub, use_scratch,
                  tile_budget):
    """Largest HW tile (multiple of `sub`, <= _MAX_HW_TILE) fitting the budget."""
    C_in_l = _round_up(C_in, 128)                 # lanes round up to 128 in VMEM
    w_bytes = 2 * k * C_in_l * C_out_p * in_isz   # weight (2x covers fallback path)
    per_row = T * (
        2 * C_in_l * in_isz                       # x block, double-buffered
        + C_in_l * in_isz                         # in-kernel x slice/reshape temp
        + 2 * C_out_p * out_isz                   # y block, double-buffered
        + (4 * C_out_p if use_scratch else 0)     # f32 accumulator scratch
        + 2 * C_out_p * 4                         # matmul result + rmw temps (f32)
    )
    avail = max(tile_budget - w_bytes, sub * per_row)
    tile = min(avail // per_row, _MAX_HW_TILE, _round_up(HW, sub))
    tile = max(sub, (int(tile) // sub) * sub)
    # v7x has 2 TensorCores sharded over the "parallel" grid axes: ensure at
    # least 2 grid steps whenever the HW axis can actually be split.
    if B * _cdiv(HW, tile) < 2:
        half = _round_up(_cdiv(HW, 2), sub)
        if half < _round_up(HW, sub):
            tile = half
    return tile


def _causal_conv3d_kernel(x_ref, w_ref, o_ref, *scratch, k, T):
    # x_ref: (1, T, HWt, C_in)   w_ref: (k, C_in, C_out_p)
    # o_ref: (1, T, HWt, C_out_p)
    # scratch: () when o_ref is f32 (accumulate in place), else one f32 VMEM
    #          block with the same shape as o_ref.
    HWt = x_ref.shape[2]
    C_in = x_ref.shape[3]
    C_out_p = w_ref.shape[2]
    acc_ref = scratch[0] if scratch else o_ref

    # Tap dt = k-1 has zero time shift: its full-size matmul initializes the
    # accumulator directly (no zero-fill + add).
    x_full = x_ref[0].reshape(T * HWt, C_in)
    acc_ref[0] = jnp.dot(
        x_full, w_ref[k - 1], preferred_element_type=jnp.float32
    ).reshape(T, HWt, C_out_p)

    # Remaining taps: output time t reads input time t - s with s = k-1-dt;
    # rows t < s read the causal zero padding (contribute nothing), so we only
    # accumulate into rows [s, T) with a sliced read-modify-write (no zeros /
    # concatenate temporaries).
    for dt in range(k - 1):
        s = k - 1 - dt
        if s >= T:
            continue  # tap looks entirely into the zero padding
        x_slc = x_ref[0, pl.ds(0, T - s), :, :].reshape((T - s) * HWt, C_in)
        p = jnp.dot(x_slc, w_ref[dt], preferred_element_type=jnp.float32)
        acc_ref[0, pl.ds(s, T - s), :, :] += p.reshape(T - s, HWt, C_out_p)

    if scratch:
        o_ref[0] = acc_ref[0].astype(o_ref.dtype)


def causal_conv3d(x, weight, kernel_size, *, compute_dtype=None,
                  channels_last=False):
    """CausalConv3d forward.

    x:      (B, C_in, T, H, W)  if channels_last=False (PyTorch NCDHW layout), or
            (B, T, H, W, C_in)  if channels_last=True (skips both HBM relayouts).
    weight: (C_out, C_in, k, 1, 1)   == nn.Conv3d(dim, dim_out, (k,1,1)).weight
    Returns the same layout as the input.
    """
    k = kernel_size
    if channels_last:
        B, T, H, W, C_in = x.shape
    else:
        B, C_in, T, H, W = x.shape
    C_out = weight.shape[0]
    HW = H * W

    out_dtype = x.dtype
    if compute_dtype is not None:          # e.g. jnp.bfloat16 to halve HBM traffic
        x = x.astype(compute_dtype)

    # Channels-last layout: (B, T, HW, C_in). No time padding (handled in-kernel).
    if channels_last:
        x_k = x.reshape(B, T, HW, C_in)
    else:
        x_k = jnp.transpose(x, (0, 2, 3, 4, 1)).reshape(B, T, HW, C_in)

    # Weight: (C_out, C_in, k, 1, 1) -> (k, C_in, C_out_p) with lane-dense C_out.
    C_out_p = _round_up(C_out, 128)
    w_k = jnp.transpose(weight[:, :, :, 0, 0], (2, 1, 0)).astype(x_k.dtype)
    if C_out_p != C_out:
        w_k = jnp.pad(w_k, ((0, 0), (0, 0), (0, C_out_p - C_out)))

    in_isz = x_k.dtype.itemsize
    out_isz = jnp.dtype(out_dtype).itemsize
    sub = max(_sublane_multiple(x_k.dtype), _sublane_multiple(out_dtype))
    use_scratch = jnp.dtype(out_dtype) != jnp.dtype(jnp.float32)

    # Generation-aware VMEM sizing (v5e/v6e: 128 MiB/TC, v7x: 64 MiB/TC).
    vmem_cap = _vmem_capacity_bytes()
    vmem_limit = max(min(int(vmem_cap * 0.82), vmem_cap - (2 << 20)), 32 << 20)
    tile_budget = int(vmem_limit * 0.80)

    hw_tile = _pick_hw_tile(T, C_in, C_out_p, k, HW, B, in_isz, out_isz, sub,
                            use_scratch, tile_budget)
    HW_pad = _round_up(HW, hw_tile)
    if HW_pad != HW:
        x_k = jnp.pad(x_k, ((0, 0), (0, 0), (0, HW_pad - HW), (0, 0)))

    kernel = functools.partial(_causal_conv3d_kernel, k=k, T=T)
    scratch_shapes = ()
    if use_scratch:
        scratch_shapes = (pltpu.VMEM((1, T, hw_tile, C_out_p), jnp.float32),)

    def run(weight_pipeline_mode):
        w_kwargs = {}
        if weight_pipeline_mode is not None:
            w_kwargs["pipeline_mode"] = weight_pipeline_mode
        w_spec = pl.BlockSpec((k, C_in, C_out_p), lambda b, h: (0, 0, 0),
                              **w_kwargs)
        return pl.pallas_call(
            kernel,
            out_shape=jax.ShapeDtypeStruct((B, T, HW_pad, C_out_p), out_dtype),
            grid_spec=pltpu.PrefetchScalarGridSpec(
                num_scalar_prefetch=0,
                grid=(B, HW_pad // hw_tile),
                in_specs=[
                    pl.BlockSpec((1, T, hw_tile, C_in), lambda b, h: (b, 0, h, 0)),
                    w_spec,
                ],
                out_specs=pl.BlockSpec((1, T, hw_tile, C_out_p),
                                       lambda b, h: (b, 0, h, 0)),
                scratch_shapes=scratch_shapes,
            ),
            compiler_params=pltpu.CompilerParams(
                dimension_semantics=("parallel", "parallel"),
                vmem_limit_bytes=vmem_limit,
            ),
        )(x_k, w_k)

    try:
        # Weight block index is constant across the grid: single-buffer it so the
        # saved copy's VMEM feeds a larger HW tile.
        y_k = run(pl.Buffered(buffer_count=1))
    except Exception:
        # JAX without BlockSpec.pipeline_mode / Buffered(1): default double-buffer.
        y_k = run(None)

    # Strip C_out / HW padding, back to the caller's layout.
    y = y_k[:, :, :HW, :C_out].reshape(B, T, H, W, C_out)
    if channels_last:
        return y.astype(out_dtype)
    return jnp.transpose(y, (0, 4, 1, 2, 3)).astype(out_dtype)


def _reference(x, weight, k):
    # Pure-JAX reference: causal pad + Conv3d (k,1,1) cross-correlation, no bias.
    x_pad = jnp.pad(x, ((0, 0), (0, 0), (k - 1, 0), (0, 0), (0, 0)))
    w = weight[:, :, :, 0, 0]  # (C_out, C_in, k)
    T = x.shape[2]
    out = jnp.zeros((x.shape[0], w.shape[0], T, x.shape[3], x.shape[4]), jnp.float32)
    for dt in range(k):
        out = out + jnp.einsum('bcthw,oc->bothw', x_pad[:, :, dt:dt + T], w[:, :, dt])
    return out.astype(x.dtype)


if __name__ == "__main__":
    key = jax.random.PRNGKey(0)
    kx, kw = jax.random.split(key)

    B, C_in, C_out, T, H, W, k = 2, 4, 8, 8, 4, 4, 3

    x = jax.random.normal(kx, (B, C_in, T, H, W), dtype=jnp.float32)
    # Deterministic synthetic weights, matches nn.Conv3d(dim, dim_out, (k,1,1)).weight
    weight = jax.random.normal(kw, (C_out, C_in, k, 1, 1), dtype=jnp.float32) * 0.1

    # f32 path: accumulates directly into the output block (no scratch).
    y = jax.block_until_ready(causal_conv3d(x, weight, k))
    y_ref = _reference(x, weight, k)
    assert y.shape == (B, C_out, T, H, W)
    assert jnp.allclose(y, y_ref, atol=1e-5, rtol=1e-5), "f32 mismatch vs reference"

    # bf16 path: exercises the f32 VMEM scratch accumulator + final cast.
    x_bf = x.astype(jnp.bfloat16)
    w_bf = weight.astype(jnp.bfloat16)
    y_bf = jax.block_until_ready(causal_conv3d(x_bf, w_bf, k))
    y_ref_bf = _reference(x_bf.astype(jnp.float32), w_bf.astype(jnp.float32), k)
    assert jnp.allclose(y_bf.astype(jnp.float32), y_ref_bf,
                        atol=2e-2, rtol=2e-2), "bf16 mismatch vs reference"

    print("KERNEL_OK")
</pallas_src>

<mosaic_0001>
module attributes {stable_mosaic.version = 11 : i64} {
  func.func @_causal_conv3d_kernel(%arg0: i32, %arg1: i32, %arg2: memref<1x8x16x4xf32, #tpu.memory_space<vmem>>, %arg3: memref<3x4x128xf32, #tpu.memory_space<vmem>>, %arg4: memref<1x8x16x128xf32, #tpu.memory_space<vmem>>) attributes {dimension_semantics = [#tpu.dimension_semantics<parallel>, #tpu.dimension_semantics<parallel>], iteration_bounds = array<i64: 2, 1>, scalar_prefetch = 0 : i64, scratch_operands = 0 : i64, tpu.core_type = #tpu.core_type<tc>, window_params = [{transform_indices = @transform_0, window_bounds = array<i64: 1, 8, 16, 4>}, {pipeline_mode = #tpu.pipeline_mode<synchronous>, transform_indices = @transform_1, window_bounds = array<i64: 3, 4, 128>}, {transform_indices = @transform_2, window_bounds = array<i64: 1, 8, 16, 128>}]} {
    %c0 = arith.constant 0 : index
    %c0_0 = arith.constant 0 : index
    %c0_1 = arith.constant 0 : index
    %c0_2 = arith.constant 0 : index
    %0 = vector.load %arg2[%c0, %c0_0, %c0_1, %c0_2] : memref<1x8x16x4xf32, #tpu.memory_space<vmem>>, vector<1x8x16x4xf32>
    %1 = vector.shape_cast %0 : vector<1x8x16x4xf32> to vector<8x16x4xf32>
    %2 = vector.shape_cast %1 : vector<8x16x4xf32> to vector<128x4xf32>
    %c2 = arith.constant 2 : index
    %c0_3 = arith.constant 0 : index
    %c0_4 = arith.constant 0 : index
    %3 = vector.load %arg3[%c2, %c0_3, %c0_4] : memref<3x4x128xf32, #tpu.memory_space<vmem>>, vector<1x4x128xf32>
    %4 = vector.shape_cast %3 : vector<1x4x128xf32> to vector<4x128xf32>
    %cst = arith.constant dense<0.000000e+00> : vector<128x128xf32>
    %5 = tpu.matmul %2, %4, %cst {dimension_numbers = #tpu.dot_dimension_numbers<[1], [0], [0], [1], [0, 0, 1, 1], [], []>} : vector<128x4xf32>, vector<4x128xf32>, vector<128x128xf32> -> vector<128x128xf32>
    %6 = vector.shape_cast %5 : vector<128x128xf32> to vector<8x16x128xf32>
    %c0_5 = arith.constant 0 : index
    %c0_6 = arith.constant 0 : index
    %c0_7 = arith.constant 0 : index
    %c0_8 = arith.constant 0 : index
    %7 = vector.load %arg4[%c0_5, %c0_6, %c0_7, %c0_8] : memref<1x8x16x128xf32, #tpu.memory_space<vmem>>, vector<1x8x16x128xf32>
    %8 = vector.shape_cast %7 : vector<1x8x16x128xf32> to vector<8x16x128xf32>
    %9 = vector.shape_cast %6 : vector<8x16x128xf32> to vector<1x8x16x128xf32>
    tpu.vector_store %arg4[%c0_5, %c0_6, %c0_7, %c0_8], %9 {strides = array<i32>} : memref<1x8x16x128xf32, #tpu.memory_space<vmem>>, vector<1x8x16x128xf32>,
    %c0_9 = arith.constant 0 : index
    %c0_10 = arith.constant 0 : index
    %c0_11 = arith.constant 0 : index
    %c0_12 = arith.constant 0 : index
    %10 = vector.load %arg2[%c0_9, %c0_10, %c0_11, %c0_12] : memref<1x8x16x4xf32, #tpu.memory_space<vmem>>, vector<1x6x16x4xf32>
    %11 = vector.shape_cast %10 : vector<1x6x16x4xf32> to vector<6x16x4xf32>
    %12 = vector.shape_cast %11 : vector<6x16x4xf32> to vector<96x4xf32>
    %c0_13 = arith.constant 0 : index
    %c0_14 = arith.constant 0 : index
    %c0_15 = arith.constant 0 : index
    %13 = vector.load %arg3[%c0_13, %c0_14, %c0_15] : memref<3x4x128xf32, #tpu.memory_space<vmem>>, vector<1x4x128xf32>
    %14 = vector.shape_cast %13 : vector<1x4x128xf32> to vector<4x128xf32>
    %cst_16 = arith.constant dense<0.000000e+00> : vector<96x128xf32>
    %15 = tpu.matmul %12, %14, %cst_16 {dimension_numbers = #tpu.dot_dimension_numbers<[1], [0], [0], [1], [0, 0, 1, 1], [], []>} : vector<96x4xf32>, vector<4x128xf32>, vector<96x128xf32> -> vector<96x128xf32>
    %c0_17 = arith.constant 0 : index
    %c2_18 = arith.constant 2 : index
    %c0_19 = arith.constant 0 : index
    %c0_20 = arith.constant 0 : index
    %16 = vector.load %arg4[%c0_17, %c2_18, %c0_19, %c0_20] : memref<1x8x16x128xf32, #tpu.memory_space<vmem>>, vector<1x6x16x128xf32>
    %17 = vector.shape_cast %16 : vector<1x6x16x128xf32> to vector<6x16x128xf32>
    %18 = vector.shape_cast %15 : vector<96x128xf32> to vector<6x16x128xf32>
    %19 = arith.addf %17, %18 : vector<6x16x128xf32>
    %c0_21 = arith.constant 0 : index
    %c2_22 = arith.constant 2 : index
    %c0_23 = arith.constant 0 : index
    %c0_24 = arith.constant 0 : index
    %20 = vector.load %arg4[%c0_21, %c2_22, %c0_23, %c0_24] : memref<1x8x16x128xf32, #tpu.memory_space<vmem>>, vector<1x6x16x128xf32>
    %21 = vector.shape_cast %20 : vector<1x6x16x128xf32> to vector<6x16x128xf32>
    %22 = vector.shape_cast %19 : vector<6x16x128xf32> to vector<1x6x16x128xf32>
    tpu.vector_store %arg4[%c0_21, %c2_22, %c0_23, %c0_24], %22 {strides = array<i32>} : memref<1x8x16x128xf32, #tpu.memory_space<vmem>>, vector<1x6x16x128xf32>,
    %c0_25 = arith.constant 0 : index
    %c0_26 = arith.constant 0 : index
    %c0_27 = arith.constant 0 : index
    %c0_28 = arith.constant 0 : index
    %23 = vector.load %arg2[%c0_25, %c0_26, %c0_27, %c0_28] : memref<1x8x16x4xf32, #tpu.memory_space<vmem>>, vector<1x7x16x4xf32>
    %24 = vector.shape_cast %23 : vector<1x7x16x4xf32> to vector<7x16x4xf32>
    %25 = vector.shape_cast %24 : vector<7x16x4xf32> to vector<112x4xf32>
    %c1 = arith.constant 1 : index
    %c0_29 = arith.constant 0 : index
    %c0_30 = arith.constant 0 : index
    %26 = vector.load %arg3[%c1, %c0_29, %c0_30] : memref<3x4x128xf32, #tpu.memory_space<vmem>>, vector<1x4x128xf32>
    %27 = vector.shape_cast %26 : vector<1x4x128xf32> to vector<4x128xf32>
    %cst_31 = arith.constant dense<0.000000e+00> : vector<112x128xf32>
    %28 = tpu.matmul %25, %27, %cst_31 {dimension_numbers = #tpu.dot_dimension_numbers<[1], [0], [0], [1], [0, 0, 1, 1], [], []>} : vector<112x4xf32>, vector<4x128xf32>, vector<112x128xf32> -> vector<112x128xf32>
    %c0_32 = arith.constant 0 : index
    %c1_33 = arith.constant 1 : index
    %c0_34 = arith.constant 0 : index
    %c0_35 = arith.constant 0 : index
    %29 = vector.load %arg4[%c0_32, %c1_33, %c0_34, %c0_35] : memref<1x8x16x128xf32, #tpu.memory_space<vmem>>, vector<1x7x16x128xf32>
    %30 = vector.shape_cast %29 : vector<1x7x16x128xf32> to vector<7x16x128xf32>
    %31 = vector.shape_cast %28 : vector<112x128xf32> to vector<7x16x128xf32>
    %32 = arith.addf %30, %31 : vector<7x16x128xf32>
    %c0_36 = arith.constant 0 : index
    %c1_37 = arith.constant 1 : index
    %c0_38 = arith.constant 0 : index
    %c0_39 = arith.constant 0 : index
    %33 = vector.load %arg4[%c0_36, %c1_37, %c0_38, %c0_39] : memref<1x8x16x128xf32, #tpu.memory_space<vmem>>, vector<1x7x16x128xf32>
    %34 = vector.shape_cast %33 : vector<1x7x16x128xf32> to vector<7x16x128xf32>
    %35 = vector.shape_cast %32 : vector<7x16x128xf32> to vector<1x7x16x128xf32>
    tpu.vector_store %arg4[%c0_36, %c1_37, %c0_38, %c0_39], %35 {strides = array<i32>} : memref<1x8x16x128xf32, #tpu.memory_space<vmem>>, vector<1x7x16x128xf32>,
    return
  }
  func.func @transform_0(%arg0: i32, %arg1: i32) -> (i32, i32, i32, i32) {
    %c0_i32 = arith.constant 0 : i32
    %c0_i32_0 = arith.constant 0 : i32
    %c0_i32_1 = arith.constant 0 : i32
    return %arg0, %c0_i32, %arg1, %c0_i32_0 : i32, i32, i32, i32
  }
  func.func @transform_1(%arg0: i32, %arg1: i32) -> (i32, i32, i32) {
    %c0_i32 = arith.constant 0 : i32
    %c0_i32_0 = arith.constant 0 : i32
    %c0_i32_1 = arith.constant 0 : i32
    %c0_i32_2 = arith.constant 0 : i32
    return %c0_i32, %c0_i32_0, %c0_i32_1 : i32, i32, i32
  }
  func.func @transform_2(%arg0: i32, %arg1: i32) -> (i32, i32, i32, i32) {
    %c0_i32 = arith.constant 0 : i32
    %c0_i32_0 = arith.constant 0 : i32
    %c0_i32_1 = arith.constant 0 : i32
    return %arg0, %c0_i32, %arg1, %c0_i32_0 : i32, i32, i32, i32
  }
}

module attributes {stable_mosaic.version = 11 : i64} {
  func.func @_causal_conv3d_kernel(%arg0: i32, %arg1: i32, %arg2: memref<1x8x16x4xf32, #tpu.memory_space<vmem>>, %arg3: memref<3x4x128xf32, #tpu.memory_space<vmem>>, %arg4: memref<1x8x16x128xf32, #tpu.memory_space<vmem>>) attributes {dimension_semantics = [#tpu.dimension_semantics<parallel>, #tpu.dimension_semantics<parallel>], iteration_bounds = array<i64: 2, 1>, scalar_prefetch = 0 : i64, scratch_operands = 0 : i64, tpu.core_type = #tpu.core_type<tc>, window_params = [{transform_indices = @transform_0, window_bounds = array<i64: 1, 8, 16, 4>}, {pipeline_mode = #tpu.pipeline_mode<synchronous>, transform_indices = @transform_1, window_bounds = array<i64: 3, 4, 128>}, {transform_indices = @transform_2, window_bounds = array<i64: 1, 8, 16, 128>}]} {
    %c0 = arith.constant 0 : index
    %c0_0 = arith.constant 0 : index
    %c0_1 = arith.constant 0 : index
    %c0_2 = arith.constant 0 : index
    %0 = vector.load %arg2[%c0, %c0_0, %c0_1, %c0_2] : memref<1x8x16x4xf32, #tpu.memory_space<vmem>>, vector<1x8x16x4xf32>
    %1 = vector.shape_cast %0 : vector<1x8x16x4xf32> to vector<8x16x4xf32>
    %2 = vector.shape_cast %1 : vector<8x16x4xf32> to vector<128x4xf32>
    %c2 = arith.constant 2 : index
    %c0_3 = arith.constant 0 : index
    %c0_4 = arith.constant 0 : index
    %3 = vector.load %arg3[%c2, %c0_3, %c0_4] : memref<3x4x128xf32, #tpu.memory_space<vmem>>, vector<1x4x128xf32>
    %4 = vector.shape_cast %3 : vector<1x4x128xf32> to vector<4x128xf32>
    %cst = arith.constant dense<0.000000e+00> : vector<128x128xf32>
    %5 = tpu.matmul %2, %4, %cst {dimension_numbers = #tpu.dot_dimension_numbers<[1], [0], [0], [1], [0, 0, 1, 1], [], []>} : vector<128x4xf32>, vector<4x128xf32>, vector<128x128xf32> -> vector<128x128xf32>
    %6 = vector.shape_cast %5 : vector<128x128xf32> to vector<8x16x128xf32>
    %c0_5 = arith.constant 0 : index
    %c0_6 = arith.constant 0 : index
    %c0_7 = arith.constant 0 : index
    %c0_8 = arith.constant 0 : index
    %7 = vector.load %arg4[%c0_5, %c0_6, %c0_7, %c0_8] : memref<1x8x16x128xf32, #tpu.memory_space<vmem>>, vector<1x8x16x128xf32>
    %8 = vector.shape_cast %7 : vector<1x8x16x128xf32> to vector<8x16x128xf32>
    %9 = vector.shape_cast %6 : vector<8x16x128xf32> to vector<1x8x16x128xf32>
    tpu.vector_store %arg4[%c0_5, %c0_6, %c0_7, %c0_8], %9 {strides = array<i32>} : memref<1x8x16x128xf32, #tpu.memory_space<vmem>>, vector<1x8x16x128xf32>,
    %c0_9 = arith.constant 0 : index
    %c0_10 = arith.constant 0 : index
    %c0_11 = arith.constant 0 : index
    %c0_12 = arith.constant 0 : index
    %10 = vector.load %arg2[%c0_9, %c0_10, %c0_11, %c0_12] : memref<1x8x16x4xf32, #tpu.memory_space<vmem>>, vector<1x6x16x4xf32>
    %11 = vector.shape_cast %10 : vector<1x6x16x4xf32> to vector<6x16x4xf32>
    %12 = vector.shape_cast %11 : vector<6x16x4xf32> to vector<96x4xf32>
    %c0_13 = arith.constant 0 : index
    %c0_14 = arith.constant 0 : index
    %c0_15 = arith.constant 0 : index
    %13 = vector.load %arg3[%c0_13, %c0_14, %c0_15] : memref<3x4x128xf32, #tpu.memory_space<vmem>>, vector<1x4x128xf32>
    %14 = vector.shape_cast %13 : vector<1x4x128xf32> to vector<4x128xf32>
    %cst_16 = arith.constant dense<0.000000e+00> : vector<96x128xf32>
    %15 = tpu.matmul %12, %14, %cst_16 {dimension_numbers = #tpu.dot_dimension_numbers<[1], [0], [0], [1], [0, 0, 1, 1], [], []>} : vector<96x4xf32>, vector<4x128xf32>, vector<96x128xf32> -> vector<96x128xf32>
    %c0_17 = arith.constant 0 : index
    %c2_18 = arith.constant 2 : index
    %c0_19 = arith.constant 0 : index
    %c0_20 = arith.constant 0 : index
    %16 = vector.load %arg4[%c0_17, %c2_18, %c0_19, %c0_20] : memref<1x8x16x128xf32, #tpu.memory_space<vmem>>, vector<1x6x16x128xf32>
    %17 = vector.shape_cast %16 : vector<1x6x16x128xf32> to vector<6x16x128xf32>
    %18 = vector.shape_cast %15 : vector<96x128xf32> to vector<6x16x128xf32>
    %19 = arith.addf %17, %18 : vector<6x16x128xf32>
    %c0_21 = arith.constant 0 : index
    %c2_22 = arith.constant 2 : index
    %c0_23 = arith.constant 0 : index
    %c0_24 = arith.constant 0 : index
    %20 = vector.load %arg4[%c0_21, %c2_22, %c0_23, %c0_24] : memref<1x8x16x128xf32, #tpu.memory_space<vmem>>, vector<1x6x16x128xf32>
    %21 = vector.shape_cast %20 : vector<1x6x16x128xf32> to vector<6x16x128xf32>
    %22 = vector.shape_cast %19 : vector<6x16x128xf32> to vector<1x6x16x128xf32>
    tpu.vector_store %arg4[%c0_21, %c2_22, %c0_23, %c0_24], %22 {strides = array<i32>} : memref<1x8x16x128xf32, #tpu.memory_space<vmem>>, vector<1x6x16x128xf32>,
    %c0_25 = arith.constant 0 : index
    %c0_26 = arith.constant 0 : index
    %c0_27 = arith.constant 0 : index
    %c0_28 = arith.constant 0 : index
    %23 = vector.load %arg2[%c0_25, %c0_26, %c0_27, %c0_28] : memref<1x8x16x4xf32, #tpu.memory_space<vmem>>, vector<1x7x16x4xf32>
    %24 = vector.shape_cast %23 : vector<1x7x16x4xf32> to vector<7x16x4xf32>
    %25 = vector.shape_cast %24 : vector<7x16x4xf32> to vector<112x4xf32>
    %c1 = arith.constant 1 : index
    %c0_29 = arith.constant 0 : index
    %c0_30 = arith.constant 0 : index
    %26 = vector.load %arg3[%c1, %c0_29, %c0_30] : memref<3x4x128xf32, #tpu.memory_space<vmem>>, vector<1x4x128xf32>
    %27 = vector.shape_cast %26 : vector<1x4x128xf32> to vector<4x128xf32>
    %cst_31 = arith.constant dense<0.000000e+00> : vector<112x128xf32>
    %28 = tpu.matmul %25, %27, %cst_31 {dimension_numbers = #tpu.dot_dimension_numbers<[1], [0], [0], [1], [0, 0, 1, 1], [], []>} : vector<112x4xf32>, vector<4x128xf32>, vector<112x128xf32> -> vector<112x128xf32>
    %c0_32 = arith.constant 0 : index
    %c1_33 = arith.constant 1 : index
    %c0_34 = arith.constant 0 : index
    %c0_35 = arith.constant 0 : index
    %29 = vector.load %arg4[%c0_32, %c1_33, %c0_34, %c0_35] : memref<1x8x16x128xf32, #tpu.memory_space<vmem>>, vector<1x7x16x128xf32>
    %30 = vector.shape_cast %29 : vector<1x7x16x128xf32> to vector<7x16x128xf32>
    %31 = vector.shape_cast %28 : vector<112x128xf32> to vector<7x16x128xf32>
    %32 = arith.addf %30, %31 : vector<7x16x128xf32>
    %c0_36 = arith.constant 0 : index
    %c1_37 = arith.constant 1 : index
    %c0_38 = arith.constant 0 : index
    %c0_39 = arith.constant 0 : index
    %33 = vector.load %arg4[%c0_36, %c1_37, %c0_38, %c0_39] : memref<1x8x16x128xf32, #tpu.memory_space<vmem>>, vector<1x7x16x128xf32>
    %34 = vector.shape_cast %33 : vector<1x7x16x128xf32> to vector<7x16x128xf32>
    %35 = vector.shape_cast %32 : vector<7x16x128xf32> to vector<1x7x16x128xf32>
    tpu.vector_store %arg4[%c0_36, %c1_37, %c0_38, %c0_39], %35 {strides = array<i32>} : memref<1x8x16x128xf32, #tpu.memory_space<vmem>>, vector<1x7x16x128xf32>,
    return
  }
  func.func @transform_0(%arg0: i32, %arg1: i32) -> (i32, i32, i32, i32) {
    %c0_i32 = arith.constant 0 : i32
    %c0_i32_0 = arith.constant 0 : i32
    %c0_i32_1 = arith.constant 0 : i32
    return %arg0, %c0_i32, %arg1, %c0_i32_0 : i32, i32, i32, i32
  }
  func.func @transform_1(%arg0: i32, %arg1: i32) -> (i32, i32, i32) {
    %c0_i32 = arith.constant 0 : i32
    %c0_i32_0 = arith.constant 0 : i32
    %c0_i32_1 = arith.constant 0 : i32
    %c0_i32_2 = arith.constant 0 : i32
    return %c0_i32, %c0_i32_0, %c0_i32_1 : i32, i32, i32
  }
  func.func @transform_2(%arg0: i32, %arg1: i32) -> (i32, i32, i32, i32) {
    %c0_i32 = arith.constant 0 : i32
    %c0_i32_0 = arith.constant 0 : i32
    %c0_i32_1 = arith.constant 0 : i32
    return %arg0, %c0_i32, %arg1, %c0_i32_0 : i32, i32, i32, i32
  }
}

</mosaic_0001>

<llo_original>
// kernel: tpu_custom_call.1
$region0: #{tpu_custom_call.1}
  #allocation0 [shape = 'u32[]', space=smem, size = 0x4, offset = 0x4, fixed_abs, tag = 'smem constant byte address 0x4 - core index']
  #allocation1 [shape = 'u32[144,128]{1,0:T(1,128)}', space=vmem, size = 0x12000, scoped, tag = 'internal scratch']
  %s0 = inlined_call_operand.vmem [shape: f32[2,8,16,4], index: 0, kind: input, shape index: {}]
  %s1 = inlined_call_operand.vmem [shape: f32[3,4,128], index: 1, kind: input, shape index: {}]
  %s2 = inlined_call_operand.hbm [shape: f32[2,8,16,128], index: 2, kind: output, shape index: {}]
  %s3 = sld [smem:[#allocation0]]
  $region41: #{tpu_custom_call.1} parent=0
    _
  %s5 = ssub.s32 1, %s3
  %s6 = scalar_select 0, %s5, %s3
  $region1: #{tpu_custom_call.1} parent=0
    #allocation2 [shape = 'u8[131072]{0}', space=vmem, size = 0x20000, scoped, tag = 'output window, operand 0']
    #allocation3 [shape = 's32[2]{0}', space=sflag, size = 0x8, scoped, tag = 'scoped memory for tpu_custom_call.1']
    %7 = vsyncpa [#allocation3], 0
    %s8 = scalar_lea.sflag [#allocation3], 1
    %9 = vsyncpa %s8, 0
    loop: start=0, step=1, limit=4
    $region2: #{tpu_custom_call.1} parent=1 // loop_pre_header
      _
    $region3: #{tpu_custom_call.1} parent=1 // loop_header
      %s11 = sphi 0, %s15
      %p12 = scmp.ge.s32.totalorder %s11, 4
      %s18 = sphi 0, %s30
      %s19 = sphi 0, %s26
      %s20 = sphi 0, %s18
      %s21 = sphi 0, %s19
      %s22 = sphi 0, %s20
      %s23 = sphi 0, %s21
      %s35 = sphi 0, %s37
      %s38 = sphi 0, %s35
      %s39 = sphi 0, %s38
      %s55 = sphi 0, %s39
      %s59 = sphi 0, %s59
      %s61 = sphi 0, %s59
      %s62 = sphi 0, %s61
      %s76 = sphi 0, %s62
      %s84 = sphi 0, %s86
      %s87 = sphi 0, %s84
      %s88 = sphi 0, %s87
      %s104 = sphi 0, %s88
    $region4: #{tpu_custom_call.1} parent=1 // loop_header_branch
      %14 = sbr.rel (%p12) target = $region8
    $region5: #{tpu_custom_call.1} parent=1 // loop_body
      %s16 = ssub.s32 %s11, 1
      %s17 = ssub.s32 %s11, 2
      %s24 = sadd.s32 1, %s19
      %p25 = scmp.ge.s32.totalorder %s24, 1
      %s26 = scalar_select %p25, 0, %s24
      %s27 = sadd.s32 1, %s18
      %s28 = scalar_select %p25, %s27, %s18
      %p29 = scmp.ge.s32.totalorder %s28, 2
      %s30 = scalar_select %p29, 0, %s28
      %s31 = ssub.s32 %s18, %s30
      %s32 = ssub.s32 %s19, %s26
      %s33 = sor.u32 %s31, %s32
      %p34 = scmp.eq.s32.totalorder %s33, 0
      %s36 = sadd.s32 %s35, 1
      %s37 = scalar_select %p34, %s35, %s36
      %p40 = pneg %p34
      %p41 = scmp.eq.s32.totalorder %s11, 1
      %p42 = por %p40, %p41
      %p43 = scmp.ne.s32.totalorder %s35, %s38
      %p44 = scmp.eq.s32.totalorder %s11, 0
      %p45 = por %p43, %p44
      %p46 = scmp.ne.s32.totalorder %s35, %s38
      %p47 = scmp.eq.s32.totalorder %s16, 1
      %p48 = por %p46, %p47
      %p49 = scmp.ne.s32.totalorder %s38, %s39
      %p50 = scmp.eq.s32.totalorder %s16, 0
      %p51 = por %p49, %p50
      %p52 = scmp.ne.s32.totalorder %s38, %s39
      %p53 = scmp.eq.s32.totalorder %s17, 1
      %p54 = por %p52, %p53
      %p56 = scmp.ne.s32.totalorder %s39, %s55
      %p57 = scmp.eq.s32.totalorder %s17, 0
      %p58 = por %p56, %p57
      %s60 = sadd.s32 %s59, 1
      %p63 = scmp.eq.s32.totalorder %s11, 1
      %p64 = scmp.ne.s32.totalorder %s59, %s61
      %p65 = scmp.eq.s32.totalorder %s11, 0
      %p66 = por %p64, %p65
      %p67 = scmp.ne.s32.totalorder %s59, %s61
      %p68 = scmp.eq.s32.totalorder %s16, 1
      %p69 = por %p67, %p68
      %p70 = scmp.ne.s32.totalorder %s61, %s62
      %p71 = scmp.eq.s32.totalorder %s16, 0
      %p72 = por %p70, %p71
      %p73 = scmp.ne.s32.totalorder %s61, %s62
      %p74 = scmp.eq.s32.totalorder %s17, 1
      %p75 = por %p73, %p74
      %p77 = scmp.ne.s32.totalorder %s62, %s76
      %p78 = scmp.eq.s32.totalorder %s17, 0
      %p79 = por %p77, %p78
      %s80 = ssub.s32 %s18, %s30
      %s81 = ssub.s32 %s19, %s26
      %s82 = sor.u32 %s80, %s81
      %p83 = scmp.eq.s32.totalorder %s82, 0
      %s85 = sadd.s32 %s84, 1
      %s86 = scalar_select %p83, %s84, %s85
      %p89 = pneg %p83
      %p90 = scmp.eq.s32.totalorder %s11, 1
      %p91 = por %p89, %p90
      %p92 = scmp.ne.s32.totalorder %s84, %s87
      %p93 = scmp.eq.s32.totalorder %s11, 0
      %p94 = por %p92, %p93
      %p95 = scmp.ne.s32.totalorder %s84, %s87
      %p96 = scmp.eq.s32.totalorder %s16, 1
      %p97 = por %p95, %p96
      %p98 = scmp.ne.s32.totalorder %s87, %s88
      %p99 = scmp.eq.s32.totalorder %s16, 0
      %p100 = por %p98, %p99
      %p101 = scmp.ne.s32.totalorder %s87, %s88
      %p102 = scmp.eq.s32.totalorder %s17, 1
      %p103 = por %p101, %p102
      %p105 = scmp.ne.s32.totalorder %s88, %s104
      %p106 = scmp.eq.s32.totalorder %s17, 0
      %p107 = por %p105, %p106
      %p108 = scmp.le.s32.totalorder 1, %s11
      %p109 = scmp.lt.s32.totalorder %s11, 3
      %p110 = pnand %p108, %p109
      %p111 = pneg %p110
      // Predicated region
      $region9: #{tpu_custom_call.1} parent=5 // pred_check
        _
      $region10: #{tpu_custom_call.1} parent=5 // pred_check_branch
        %113 = sbr.rel (%p110) target = $region12
      $region11: #{tpu_custom_call.1} parent=5 // pred_region
        %s114 = ssub.s32 %s11, 1
        // Predicated region
        $region13: #{tpu_custom_call.1} parent=11 // pred_check
          %p115 = pneg %p72
        $region14: #{tpu_custom_call.1} parent=11 // pred_check_branch
          %117 = sbr.rel (%p115) target = $region16
        $region15: #{tpu_custom_call.1} parent=11 // pred_region
          _
        $region16: #{tpu_custom_call.1} parent=11 // pred_fallthru
          _
      $region12: #{tpu_custom_call.1} parent=5 // pred_fallthru
        _
      %p118 = scmp.lt.s32.totalorder %s11, 2
      // Predicated region
      $region17: #{tpu_custom_call.1} parent=5 // pred_check
        %p119 = pneg %p118
      $region18: #{tpu_custom_call.1} parent=5 // pred_check_branch
        %121 = sbr.rel (%p119) target = $region20
      $region19: #{tpu_custom_call.1} parent=5 // pred_region
        // Predicated region
        $region21: #{tpu_custom_call.1} parent=19 // pred_check
          %p122 = pneg %p45
        $region22: #{tpu_custom_call.1} parent=19 // pred_check_branch
          %124 = sbr.rel (%p122) target = $region24
        $region23: #{tpu_custom_call.1} parent=19 // pred_region
          %s125 = smul.u32 2, %s19
          %p126 = scmp.lt.s32.totalorder %s18, 1
          %s127 = scalar_select %p126, %s18, 1
          %p128 = scmp.lt.s32.totalorder %s125, 1
          %s129 = scalar_select %p128, %s125, 1
          %s130 = smul.addr %s127, 16
          %s131 = sadd.s32 %s129, %s130
          %s132 = smul.addr %s131, 8
          %s133 = scalar_lea.vmem %s0, %s132
          %s134 = smul.u32 2, %s19
        $region24: #{tpu_custom_call.1} parent=19 // pred_fallthru
          _
      $region20: #{tpu_custom_call.1} parent=5 // pred_fallthru
        _
      %p135 = scmp.le.s32.totalorder 1, %s11
      %p136 = scmp.lt.s32.totalorder %s11, 3
      %p137 = pnand %p135, %p136
      %p138 = pneg %p137
      // Predicated region
      $region25: #{tpu_custom_call.1} parent=5 // pred_check
        _
      $region26: #{tpu_custom_call.1} parent=5 // pred_check_branch
        %140 = sbr.rel (%p137) target = $region28
      $region27: #{tpu_custom_call.1} parent=5 // pred_region
        %s141 = ssub.s32 %s11, 1
        %s142 = smul.u32 2, %s21
        %p143 = scmp.lt.s32.totalorder %s20, 1
        %s144 = scalar_select %p143, %s20, 1
        %p145 = scmp.lt.s32.totalorder %s142, 1
        %s146 = scalar_select %p145, %s142, 1
        %s147 = smul.addr %s144, 16
        %s148 = sadd.s32 %s146, %s147
        %s149 = smul.addr %s148, 8
        %s150 = scalar_lea.vmem %s0, %s149
        %p151 = pneg %p51
        %p152 = pneg %p48
        %p153 = pneg %p72
        %p154 = pneg %p69
        %p155 = pneg %p100
        %p156 = pneg %p97
        %s157 = sand.u32 %s87, 1
        %s158 = scalar_lea.sflag [#allocation3], %s157
        %s159 = sand.u32 %s87, 1
        %s160 = smul.addr %s159, 128
        %s161 = scalar_lea.vmem [#allocation2], %s160
        %s162 = smul.u32 2, %s21
        %p163 = scmp.lt.s32.totalorder %s20, 1
        %s164 = scalar_select %p163, %s20, 1
        %p165 = scmp.lt.s32.totalorder %s162, 1
        %s166 = scalar_select %p165, %s162, 1
        %s167 = smul.addr %s164, 16
        %s168 = sadd.s32 %s166, %s167
        %s169 = smul.addr %s168, 8
        %s170 = scalar_lea.vmem %s0, %s169
        %s171 = smul.u32 2, %s21
        %s172 = smul.u32 2, %s21
        %v173 = vld [vmem:[%s170] sm:$0xff]
        %v174 = vld [vmem:[%s170 + $0x8] sm:$0xff]
        %v175 = vld [vmem:[%s170 + $0x10] sm:$0xff]
        %v176 = vld [vmem:[%s170 + $0x18] sm:$0xff]
        %v177 = vld [vmem:[%s170 + $0x20] sm:$0xff]
        %v178 = vld [vmem:[%s170 + $0x28] sm:$0xff]
        %v179 = vld [vmem:[%s170 + $0x30] sm:$0xff]
        %v180 = vld [vmem:[%s170 + $0x38] sm:$0xff]
        %v181 = vld [vmem:[%s170 + $0x40] sm:$0xff]
        %v182 = vld [vmem:[%s170 + $0x48] sm:$0xff]
        %v183 = vld [vmem:[%s170 + $0x50] sm:$0xff]
        %v184 = vld [vmem:[%s170 + $0x58] sm:$0xff]
        %v185 = vld [vmem:[%s170 + $0x60] sm:$0xff]
        %v186 = vld [vmem:[%s170 + $0x68] sm:$0xff]
        %v187 = vld [vmem:[%s170 + $0x70] sm:$0xff]
        %v188 = vld [vmem:[%s170 + $0x78] sm:$0xff]
        %s189 = scalar_lea.vmem %s1, 8
        %v190 = vld [vmem:[%s189] sm:$0xf]
        %vm191 = vcmask 31744
        %v193 = vsel %vm191, %v173, 0
        %v196 = vsel %vm191, %v174, 0
        %v199 = vsel %vm191, %v175, 0
        %v202 = vsel %vm191, %v176, 0
        %v205 = vsel %vm191, %v177, 0
        %v208 = vsel %vm191, %v178, 0
        %v211 = vsel %vm191, %v179, 0
        %v214 = vsel %vm191, %v180, 0
        %v217 = vsel %vm191, %v181, 0
        %v220 = vsel %vm191, %v182, 0
        %v223 = vsel %vm191, %v183, 0
        %v226 = vsel %vm191, %v184, 0
        %v229 = vsel %vm191, %v185, 0
        %v232 = vsel %vm191, %v186, 0
        %v235 = vsel %vm191, %v187, 0
        %v238 = vsel %vm191, %v188, 0
        %vm240 = vcmask 1043456
        %v242 = vsel %vm240, %v190, 0
        %244 = vmatprep.subr.mxu0 0.0
        %245 = vmatpush1.msra.mxu0 %v242
        %246 = vmatprep.subr.mxu0 0.0
        %247 = vmatpush1.msra.mxu0 0.0
        %248 = vmatprep.subr.mxu0 0.0
        %249 = vmatpush1.msra.mxu0 0.0
        %250 = vmatprep.subr.mxu0 0.0
        %251 = vmatpush1.msra.mxu0 0.0
        %252 = vmatprep.subr.mxu0 0.0
        %253 = vmatpush1.msra.mxu0 0.0
        %254 = vmatprep.subr.mxu0 0.0
        %255 = vmatpush1.msra.mxu0 0.0
        %256 = vmatprep.subr.mxu0 0.0
        %257 = vmatpush1.msra.mxu0 0.0
        %258 = vmatprep.subr.mxu0 0.0
        %259 = vmatpush1.msra.mxu0 0.0
        %260 = vmatprep.subr.mxu0 0.0
        %261 = vmatpush1.msra.mxu0 0.0
        %262 = vmatprep.subr.mxu0 0.0
        %263 = vmatpush1.msra.mxu0 0.0
        %264 = vmatprep.subr.mxu0 0.0
        %265 = vmatpush1.msra.mxu0 0.0
        %266 = vmatprep.subr.mxu0 0.0
        %267 = vmatpush1.msra.mxu0 0.0
        %268 = vmatprep.subr.mxu0 0.0
        %269 = vmatpush1.msra.mxu0 0.0
        %270 = vmatprep.subr.mxu0 0.0
        %271 = vmatpush1.msra.mxu0 0.0
        %272 = vmatprep.subr.mxu0 0.0
        %273 = vmatpush1.msra.mxu0 0.0
        %274 = vmatprep.subr.mxu0 0.0
        %275 = vmatpush1.msra.mxu0 0.0
        %276 = vmatprep.subr.mxu0 0.0
        %277 = vmatpush1.msra.mxu0 0.0
        %278 = vmatprep.subr.mxu0 0.0
        %279 = vmatpush1.msra.mxu0 0.0
        %280 = vmatprep.subr.mxu0 0.0
        %281 = vmatpush1.msra.mxu0 0.0
        %282 = vmatprep.subr.mxu0 0.0
        %283 = vmatpush1.msra.mxu0 0.0
        %284 = vmatprep.subr.mxu0 0.0
        %285 = vmatpush1.msra.mxu0 0.0
        %286 = vmatprep.subr.mxu0 0.0
        %287 = vmatpush1.msra.mxu0 0.0
        %288 = vmatprep.subr.mxu0 0.0
        %289 = vmatpush1.msra.mxu0 0.0
        %290 = vmatprep.subr.mxu0 0.0
        %291 = vmatpush1.msra.mxu0 0.0
        %292 = vmatprep.subr.mxu0 0.0
        %293 = vmatpush1.msra.mxu0 0.0
        %294 = vmatprep.subr.mxu0 0.0
        %295 = vmatpush1.msra.mxu0 0.0
        %296 = vmatprep.subr.mxu0 0.0
        %297 = vmatpush1.msra.mxu0 0.0
        %298 = vmatprep.subr.mxu0 0.0
        %299 = vmatpush1.msra.mxu0 0.0
        %300 = vmatprep.subr.mxu0 0.0
        %301 = vmatpush1.msra.mxu0 0.0
        %302 = vmatprep.subr.mxu0 0.0
        %303 = vmatpush1.msra.mxu0 0.0
        %304 = vmatprep.subr.mxu0 0.0
        %305 = vmatpush1.msra.mxu0 0.0
        %306 = vmatprep.subr.mxu0 0.0
        %307 = vmatpush1.msra.mxu0 0.0
        %308 = vmatprep.mubr.f32.mxu0 0.0
        %309 = vmatmul.mubr.f32.gmra.mrb[0].mxu0 %v193
        %v310 = vpop.f32.mrb[0].mxu0
        %v311 = vadd.f32 0.0, %v310
        %v312 = vpop.f32.mrb[0].mxu0
        %313 = vmatprep.mubr.f32.mxu0 0.0
        %314 = vmatmul.mubr.f32.gmra.mrb[0].mxu0 %v196
        %v315 = vpop.f32.mrb[0].mxu0
        %v316 = vadd.f32 0.0, %v315
        %v317 = vpop.f32.mrb[0].mxu0
        %318 = vmatprep.mubr.f32.mxu0 0.0
        %319 = vmatmul.mubr.f32.gmra.mrb[0].mxu0 %v199
        %v320 = vpop.f32.mrb[0].mxu0
        %v321 = vadd.f32 0.0, %v320
        %v322 = vpop.f32.mrb[0].mxu0
        %323 = vmatprep.mubr.f32.mxu0 0.0
        %324 = vmatmul.mubr.f32.gmra.mrb[0].mxu0 %v202
        %v325 = vpop.f32.mrb[0].mxu0
        %v326 = vadd.f32 0.0, %v325
        %v327 = vpop.f32.mrb[0].mxu0
        %328 = vmatprep.mubr.f32.mxu0 0.0
        %329 = vmatmul.mubr.f32.gmra.mrb[0].mxu0 %v205
        %v330 = vpop.f32.mrb[0].mxu0
        %v331 = vadd.f32 0.0, %v330
        %v332 = vpop.f32.mrb[0].mxu0
        %333 = vmatprep.mubr.f32.mxu0 0.0
        %334 = vmatmul.mubr.f32.gmra.mrb[0].mxu0 %v208
        %v335 = vpop.f32.mrb[0].mxu0
        %v336 = vadd.f32 0.0, %v335
        %v337 = vpop.f32.mrb[0].mxu0
        %338 = vmatprep.mubr.f32.mxu0 0.0
        %339 = vmatmul.mubr.f32.gmra.mrb[0].mxu0 %v211
        %v340 = vpop.f32.mrb[0].mxu0
        %v341 = vadd.f32 0.0, %v340
        %v342 = vpop.f32.mrb[0].mxu0
        %343 = vmatprep.mubr.f32.mxu0 0.0
        %344 = vmatmul.mubr.f32.gmra.mrb[0].mxu0 %v214
        %v345 = vpop.f32.mrb[0].mxu0
        %v346 = vadd.f32 0.0, %v345
        %v347 = vpop.f32.mrb[0].mxu0
        %348 = vmatprep.mubr.f32.mxu0 0.0
        %349 = vmatmul.mubr.f32.gmra.mrb[0].mxu0 %v217
        %v350 = vpop.f32.mrb[0].mxu0
        %v351 = vadd.f32 0.0, %v350
        %v352 = vpop.f32.mrb[0].mxu0
        %353 = vmatprep.mubr.f32.mxu0 0.0
        %354 = vmatmul.mubr.f32.gmra.mrb[0].mxu0 %v220
        %v355 = vpop.f32.mrb[0].mxu0
        %v356 = vadd.f32 0.0, %v355
        %v357 = vpop.f32.mrb[0].mxu0
        %358 = vmatprep.mubr.f32.mxu0 0.0
        %359 = vmatmul.mubr.f32.gmra.mrb[0].mxu0 %v223
        %v360 = vpop.f32.mrb[0].mxu0
        %v361 = vadd.f32 0.0, %v360
        %v362 = vpop.f32.mrb[0].mxu0
        %363 = vmatprep.mubr.f32.mxu0 0.0
        %364 = vmatmul.mubr.f32.gmra.mrb[0].mxu0 %v226
        %v365 = vpop.f32.mrb[0].mxu0
        %v366 = vadd.f32 0.0, %v365
        %v367 = vpop.f32.mrb[0].mxu0
        %368 = vmatprep.mubr.f32.mxu0 0.0
        %369 = vmatmul.mubr.f32.gmra.mrb[0].mxu0 %v229
        %v370 = vpop.f32.mrb[0].mxu0
        %v371 = vadd.f32 0.0, %v370
        %v372 = vpop.f32.mrb[0].mxu0
        %373 = vmatprep.mubr.f32.mxu0 0.0
        %374 = vmatmul.mubr.f32.gmra.mrb[0].mxu0 %v232
        %v375 = vpop.f32.mrb[0].mxu0
        %v376 = vadd.f32 0.0, %v375
        %v377 = vpop.f32.mrb[0].mxu0
        %378 = vmatprep.mubr.f32.mxu0 0.0
        %379 = vmatmul.mubr.f32.gmra.mrb[0].mxu0 %v235
        %v380 = vpop.f32.mrb[0].mxu0
        %v381 = vadd.f32 0.0, %v380
        %v382 = vpop.f32.mrb[0].mxu0
        %383 = vmatprep.mubr.f32.mxu0 0.0
        %384 = vmatmul.mubr.f32.gmra.mrb[0].mxu0 %v238
        %v385 = vpop.f32.mrb[0].mxu0
        %v386 = vadd.f32 0.0, %v385
        %v387 = vpop.f32.mrb[0].mxu0
        %388 = vdwg.mxu0
        %389 = vst [vmem:[%s161] sm:$0xff] %v311
        %390 = vst [vmem:[%s161 + $0x8] sm:$0xff] %v316
        %391 = vst [vmem:[%s161 + $0x10] sm:$0xff] %v321
        %392 = vst [vmem:[%s161 + $0x18] sm:$0xff] %v326
        %393 = vst [vmem:[%s161 + $0x20] sm:$0xff] %v331
        %394 = vst [vmem:[%s161 + $0x28] sm:$0xff] %v336
        %395 = vst [vmem:[%s161 + $0x30] sm:$0xff] %v341
        %396 = vst [vmem:[%s161 + $0x38] sm:$0xff] %v346
        %397 = vst [vmem:[%s161 + $0x40] sm:$0xff] %v351
        %398 = vst [vmem:[%s161 + $0x48] sm:$0xff] %v356
        %399 = vst [vmem:[%s161 + $0x50] sm:$0xff] %v361
        %400 = vst [vmem:[%s161 + $0x58] sm:$0xff] %v366
        %401 = vst [vmem:[%s161 + $0x60] sm:$0xff] %v371
        %402 = vst [vmem:[%s161 + $0x68] sm:$0xff] %v376
        %403 = vst [vmem:[%s161 + $0x70] sm:$0xff] %v381
        %404 = vst [vmem:[%s161 + $0x78] sm:$0xff] %v386
        %v405 = vld [vmem:[%s170] sm:$0xff]
        %v406 = vld [vmem:[%s170 + $0x8] sm:$0xff]
        %v407 = vld [vmem:[%s170 + $0x10] sm:$0xff]
        %v408 = vld [vmem:[%s170 + $0x18] sm:$0xff]
        %v409 = vld [vmem:[%s170 + $0x20] sm:$0xff]
        %v410 = vld [vmem:[%s170 + $0x28] sm:$0xff]
        %v411 = vld [vmem:[%s170 + $0x30] sm:$0xff]
        %v412 = vld [vmem:[%s170 + $0x38] sm:$0xff]
        %v413 = vld [vmem:[%s170 + $0x40] sm:$0xff]
        %v414 = vld [vmem:[%s170 + $0x48] sm:$0xff]
        %v415 = vld [vmem:[%s170 + $0x50] sm:$0xff]
        %v416 = vld [vmem:[%s170 + $0x58] sm:$0xff]
        %v417 = vld [vmem:[%s1] sm:$0xf]
        %v419 = vsel %vm191, %v405, 0
        %v422 = vsel %vm191, %v406, 0
        %v425 = vsel %vm191, %v407, 0
        %v428 = vsel %vm191, %v408, 0
        %v431 = vsel %vm191, %v409, 0
        %v434 = vsel %vm191, %v410, 0
        %v437 = vsel %vm191, %v411, 0
        %v440 = vsel %vm191, %v412, 0
        %v443 = vsel %vm191, %v413, 0
        %v446 = vsel %vm191, %v414, 0
        %v449 = vsel %vm191, %v415, 0
        %v452 = vsel %vm191, %v416, 0
        %v455 = vsel %vm240, %v417, 0
        %457 = vmatprep.subr.mxu0 0.0
        %458 = vmatpush1.msra.mxu0 %v455
        %459 = vmatprep.subr.mxu0 0.0
        %460 = vmatpush1.msra.mxu0 0.0
        %461 = vmatprep.subr.mxu0 0.0
        %462 = vmatpush1.msra.mxu0 0.0
        %463 = vmatprep.subr.mxu0 0.0
        %464 = vmatpush1.msra.mxu0 0.0
        %465 = vmatprep.subr.mxu0 0.0
        %466 = vmatpush1.msra.mxu0 0.0
        %467 = vmatprep.subr.mxu0 0.0
        %468 = vmatpush1.msra.mxu0 0.0
        %469 = vmatprep.subr.mxu0 0.0
        %470 = vmatpush1.msra.mxu0 0.0
        %471 = vmatprep.subr.mxu0 0.0
        %472 = vmatpush1.msra.mxu0 0.0
        %473 = vmatprep.subr.mxu0 0.0
        %474 = vmatpush1.msra.mxu0 0.0
        %475 = vmatprep.subr.mxu0 0.0
        %476 = vmatpush1.msra.mxu0 0.0
        %477 = vmatprep.subr.mxu0 0.0
        %478 = vmatpush1.msra.mxu0 0.0
        %479 = vmatprep.subr.mxu0 0.0
        %480 = vmatpush1.msra.mxu0 0.0
        %481 = vmatprep.subr.mxu0 0.0
        %482 = vmatpush1.msra.mxu0 0.0
        %483 = vmatprep.subr.mxu0 0.0
        %484 = vmatpush1.msra.mxu0 0.0
        %485 = vmatprep.subr.mxu0 0.0
        %486 = vmatpush1.msra.mxu0 0.0
        %487 = vmatprep.subr.mxu0 0.0
        %488 = vmatpush1.msra.mxu0 0.0
        %489 = vmatprep.subr.mxu0 0.0
        %490 = vmatpush1.msra.mxu0 0.0
        %491 = vmatprep.subr.mxu0 0.0
        %492 = vmatpush1.msra.mxu0 0.0
        %493 = vmatprep.subr.mxu0 0.0
        %494 = vmatpush1.msra.mxu0 0.0
        %495 = vmatprep.subr.mxu0 0.0
        %496 = vmatpush1.msra.mxu0 0.0
        %497 = vmatprep.subr.mxu0 0.0
        %498 = vmatpush1.msra.mxu0 0.0
        %499 = vmatprep.subr.mxu0 0.0
        %500 = vmatpush1.msra.mxu0 0.0
        %501 = vmatprep.subr.mxu0 0.0
        %502 = vmatpush1.msra.mxu0 0.0
        %503 = vmatprep.subr.mxu0 0.0
        %504 = vmatpush1.msra.mxu0 0.0
        %505 = vmatprep.subr.mxu0 0.0
        %506 = vmatpush1.msra.mxu0 0.0
        %507 = vmatprep.subr.mxu0 0.0
        %508 = vmatpush1.msra.mxu0 0.0
        %509 = vmatprep.subr.mxu0 0.0
        %510 = vmatpush1.msra.mxu0 0.0
        %511 = vmatprep.subr.mxu0 0.0
        %512 = vmatpush1.msra.mxu0 0.0
        %513 = vmatprep.subr.mxu0 0.0
        %514 = vmatpush1.msra.mxu0 0.0
        %515 = vmatprep.subr.mxu0 0.0
        %516 = vmatpush1.msra.mxu0 0.0
        %517 = vmatprep.subr.mxu0 0.0
        %518 = vmatpush1.msra.mxu0 0.0
        %519 = vmatprep.subr.mxu0 0.0
        %520 = vmatpush1.msra.mxu0 0.0
        %521 = vmatprep.mubr.f32.mxu0 0.0
        %522 = vmatmul.mubr.f32.gmra.mrb[0].mxu0 %v419
        %v523 = vpop.f32.mrb[0].mxu0
        %v524 = vadd.f32 0.0, %v523
        %v525 = vpop.f32.mrb[0].mxu0
        %526 = vmatprep.mubr.f32.mxu0 0.0
        %527 = vmatmul.mubr.f32.gmra.mrb[0].mxu0 %v422
        %v528 = vpop.f32.mrb[0].mxu0
        %v529 = vadd.f32 0.0, %v528
        %v530 = vpop.f32.mrb[0].mxu0
        %531 = vmatprep.mubr.f32.mxu0 0.0
        %532 = vmatmul.mubr.f32.gmra.mrb[0].mxu0 %v425
        %v533 = vpop.f32.mrb[0].mxu0
        %v534 = vadd.f32 0.0, %v533
        %v535 = vpop.f32.mrb[0].mxu0
        %536 = vmatprep.mubr.f32.mxu0 0.0
        %537 = vmatmul.mubr.f32.gmra.mrb[0].mxu0 %v428
        %v538 = vpop.f32.mrb[0].mxu0
        %v539 = vadd.f32 0.0, %v538
        %v540 = vpop.f32.mrb[0].mxu0
        %541 = vmatprep.mubr.f32.mxu0 0.0
        %542 = vmatmul.mubr.f32.gmra.mrb[0].mxu0 %v431
        %v543 = vpop.f32.mrb[0].mxu0
        %v544 = vadd.f32 0.0, %v543
        %v545 = vpop.f32.mrb[0].mxu0
        %546 = vmatprep.mubr.f32.mxu0 0.0
        %547 = vmatmul.mubr.f32.gmra.mrb[0].mxu0 %v434
        %v548 = vpop.f32.mrb[0].mxu0
        %v549 = vadd.f32 0.0, %v548
        %v550 = vpop.f32.mrb[0].mxu0
        %551 = vmatprep.mubr.f32.mxu0 0.0
        %552 = vmatmul.mubr.f32.gmra.mrb[0].mxu0 %v437
        %v553 = vpop.f32.mrb[0].mxu0
        %v554 = vadd.f32 0.0, %v553
        %v555 = vpop.f32.mrb[0].mxu0
        %556 = vmatprep.mubr.f32.mxu0 0.0
        %557 = vmatmul.mubr.f32.gmra.mrb[0].mxu0 %v440
        %v558 = vpop.f32.mrb[0].mxu0
        %v559 = vadd.f32 0.0, %v558
        %v560 = vpop.f32.mrb[0].mxu0
        %561 = vmatprep.mubr.f32.mxu0 0.0
        %562 = vmatmul.mubr.f32.gmra.mrb[0].mxu0 %v443
        %v563 = vpop.f32.mrb[0].mxu0
        %v564 = vadd.f32 0.0, %v563
        %v565 = vpop.f32.mrb[0].mxu0
        %566 = vmatprep.mubr.f32.mxu0 0.0
        %567 = vmatmul.mubr.f32.gmra.mrb[0].mxu0 %v446
        %v568 = vpop.f32.mrb[0].mxu0
        %v569 = vadd.f32 0.0, %v568
        %v570 = vpop.f32.mrb[0].mxu0
        %571 = vmatprep.mubr.f32.mxu0 0.0
        %572 = vmatmul.mubr.f32.gmra.mrb[0].mxu0 %v449
        %v573 = vpop.f32.mrb[0].mxu0
        %v574 = vadd.f32 0.0, %v573
        %v575 = vpop.f32.mrb[0].mxu0
        %576 = vmatprep.mubr.f32.mxu0 0.0
        %577 = vmatmul.mubr.f32.gmra.mrb[0].mxu0 %v452
        %v578 = vpop.f32.mrb[0].mxu0
        %v579 = vadd.f32 0.0, %v578
        %v580 = vpop.f32.mrb[0].mxu0
        %581 = vdwg.mxu0
        %s582 = scalar_lea.vmem %s161, 32 [#allocation2]
        %v583 = vld [vmem:[%s582] sm:$0xff]
        %v584 = vld [vmem:[%s582 + $0x8] sm:$0xff]
        %v585 = vld [vmem:[%s582 + $0x10] sm:$0xff]
        %v586 = vld [vmem:[%s582 + $0x18] sm:$0xff]
        %v587 = vld [vmem:[%s582 + $0x20] sm:$0xff]
        %v588 = vld [vmem:[%s582 + $0x28] sm:$0xff]
        %v589 = vld [vmem:[%s582 + $0x30] sm:$0xff]
        %v590 = vld [vmem:[%s582 + $0x38] sm:$0xff]
        %v591 = vld [vmem:[%s582 + $0x40] sm:$0xff]
        %v592 = vld [vmem:[%s582 + $0x48] sm:$0xff]
        %v593 = vld [vmem:[%s582 + $0x50] sm:$0xff]
        %v594 = vld [vmem:[%s582 + $0x58] sm:$0xff]
        %v595 = vadd.f32 %v583, %v524
        %v596 = vadd.f32 %v584, %v529
        %v597 = vadd.f32 %v585, %v534
        %v598 = vadd.f32 %v586, %v539
        %v599 = vadd.f32 %v587, %v544
        %v600 = vadd.f32 %v588, %v549
        %v601 = vadd.f32 %v589, %v554
        %v602 = vadd.f32 %v590, %v559
        %v603 = vadd.f32 %v591, %v564
        %v604 = vadd.f32 %v592, %v569
        %v605 = vadd.f32 %v593, %v574
        %v606 = vadd.f32 %v594, %v579
        %607 = vst [vmem:[%s582] sm:$0xff] %v595
        %608 = vst [vmem:[%s582 + $0x8] sm:$0xff] %v596
        %609 = vst [vmem:[%s582 + $0x10] sm:$0xff] %v597
        %610 = vst [vmem:[%s582 + $0x18] sm:$0xff] %v598
        %611 = vst [vmem:[%s582 + $0x20] sm:$0xff] %v599
        %612 = vst [vmem:[%s582 + $0x28] sm:$0xff] %v600
        %613 = vst [vmem:[%s582 + $0x30] sm:$0xff] %v601
        %614 = vst [vmem:[%s582 + $0x38] sm:$0xff] %v602
        %615 = vst [vmem:[%s582 + $0x40] sm:$0xff] %v603
        %616 = vst [vmem:[%s582 + $0x48] sm:$0xff] %v604
        %617 = vst [vmem:[%s582 + $0x50] sm:$0xff] %v605
        %618 = vst [vmem:[%s582 + $0x58] sm:$0xff] %v606
        %v619 = vld [vmem:[%s170] sm:$0xff]
        %v620 = vld [vmem:[%s170 + $0x8] sm:$0xff]
        %v621 = vld [vmem:[%s170 + $0x10] sm:$0xff]
        %v622 = vld [vmem:[%s170 + $0x18] sm:$0xff]
        %v623 = vld [vmem:[%s170 + $0x20] sm:$0xff]
        %v624 = vld [vmem:[%s170 + $0x28] sm:$0xff]
        %v625 = vld [vmem:[%s170 + $0x30] sm:$0xff]
        %v626 = vld [vmem:[%s170 + $0x38] sm:$0xff]
        %v627 = vld [vmem:[%s170 + $0x40] sm:$0xff]
        %v628 = vld [vmem:[%s170 + $0x48] sm:$0xff]
        %v629 = vld [vmem:[%s170 + $0x50] sm:$0xff]
        %v630 = vld [vmem:[%s170 + $0x58] sm:$0xff]
        %v631 = vld [vmem:[%s170 + $0x60] sm:$0xff]
        %v632 = vld [vmem:[%s170 + $0x68] sm:$0xff]
        %s633 = scalar_lea.vmem %s1, 4
        %v634 = vld [vmem:[%s633] sm:$0xf]
        %v636 = vsel %vm191, %v619, 0
        %v639 = vsel %vm191, %v620, 0
        %v642 = vsel %vm191, %v621, 0
        %v645 = vsel %vm191, %v622, 0
        %v648 = vsel %vm191, %v623, 0
        %v651 = vsel %vm191, %v624, 0
        %v654 = vsel %vm191, %v625, 0
        %v657 = vsel %vm191, %v626, 0
        %v660 = vsel %vm191, %v627, 0
        %v663 = vsel %vm191, %v628, 0
        %v666 = vsel %vm191, %v629, 0
        %v669 = vsel %vm191, %v630, 0
        %v672 = vsel %vm191, %v631, 0
        %v675 = vsel %vm191, %v632, 0
        %v678 = vsel %vm240, %v634, 0
        %680 = vmatprep.subr.mxu0 0.0
        %681 = vmatpush1.msra.mxu0 %v678
        %682 = vmatprep.subr.mxu0 0.0
        %683 = vmatpush1.msra.mxu0 0.0
        %684 = vmatprep.subr.mxu0 0.0
        %685 = vmatpush1.msra.mxu0 0.0
        %686 = vmatprep.subr.mxu0 0.0
        %687 = vmatpush1.msra.mxu0 0.0
        %688 = vmatprep.subr.mxu0 0.0
        %689 = vmatpush1.msra.mxu0 0.0
        %690 = vmatprep.subr.mxu0 0.0
        %691 = vmatpush1.msra.mxu0 0.0
        %692 = vmatprep.subr.mxu0 0.0
        %693 = vmatpush1.msra.mxu0 0.0
        %694 = vmatprep.subr.mxu0 0.0
        %695 = vmatpush1.msra.mxu0 0.0
        %696 = vmatprep.subr.mxu0 0.0
        %697 = vmatpush1.msra.mxu0 0.0
        %698 = vmatprep.subr.mxu0 0.0
        %699 = vmatpush1.msra.mxu0 0.0
        %700 = vmatprep.subr.mxu0 0.0
        %701 = vmatpush1.msra.mxu0 0.0
        %702 = vmatprep.subr.mxu0 0.0
        %703 = vmatpush1.msra.mxu0 0.0
        %704 = vmatprep.subr.mxu0 0.0
        %705 = vmatpush1.msra.mxu0 0.0
        %706 = vmatprep.subr.mxu0 0.0
        %707 = vmatpush1.msra.mxu0 0.0
        %708 = vmatprep.subr.mxu0 0.0
        %709 = vmatpush1.msra.mxu0 0.0
        %710 = vmatprep.subr.mxu0 0.0
        %711 = vmatpush1.msra.mxu0 0.0
        %712 = vmatprep.subr.mxu0 0.0
        %713 = vmatpush1.msra.mxu0 0.0
        %714 = vmatprep.subr.mxu0 0.0
        %715 = vmatpush1.msra.mxu0 0.0
        %716 = vmatprep.subr.mxu0 0.0
        %717 = vmatpush1.msra.mxu0 0.0
        %718 = vmatprep.subr.mxu0 0.0
        %719 = vmatpush1.msra.mxu0 0.0
        %720 = vmatprep.subr.mxu0 0.0
        %721 = vmatpush1.msra.mxu0 0.0
        %722 = vmatprep.subr.mxu0 0.0
        %723 = vmatpush1.msra.mxu0 0.0
        %724 = vmatprep.subr.mxu0 0.0
        %725 = vmatpush1.msra.mxu0 0.0
        %726 = vmatprep.subr.mxu0 0.0
        %727 = vmatpush1.msra.mxu0 0.0
        %728 = vmatprep.subr.mxu0 0.0
        %729 = vmatpush1.msra.mxu0 0.0
        %730 = vmatprep.subr.mxu0 0.0
        %731 = vmatpush1.msra.mxu0 0.0
        %732 = vmatprep.subr.mxu0 0.0
        %733 = vmatpush1.msra.mxu0 0.0
        %734 = vmatprep.subr.mxu0 0.0
        %735 = vmatpush1.msra.mxu0 0.0
        %736 = vmatprep.subr.mxu0 0.0
        %737 = vmatpush1.msra.mxu0 0.0
        %738 = vmatprep.subr.mxu0 0.0
        %739 = vmatpush1.msra.mxu0 0.0
        %740 = vmatprep.subr.mxu0 0.0
        %741 = vmatpush1.msra.mxu0 0.0
        %742 = vmatprep.subr.mxu0 0.0
        %743 = vmatpush1.msra.mxu0 0.0
        %744 = vmatprep.mubr.f32.mxu0 0.0
        %745 = vmatmul.mubr.f32.gmra.mrb[0].mxu0 %v636
        %v746 = vpop.f32.mrb[0].mxu0
        %v747 = vadd.f32 0.0, %v746
        %v748 = vpop.f32.mrb[0].mxu0
        %749 = vmatprep.mubr.f32.mxu0 0.0
        %750 = vmatmul.mubr.f32.gmra.mrb[0].mxu0 %v639
        %v751 = vpop.f32.mrb[0].mxu0
        %v752 = vadd.f32 0.0, %v751
        %v753 = vpop.f32.mrb[0].mxu0
        %754 = vmatprep.mubr.f32.mxu0 0.0
        %755 = vmatmul.mubr.f32.gmra.mrb[0].mxu0 %v642
        %v756 = vpop.f32.mrb[0].mxu0
        %v757 = vadd.f32 0.0, %v756
        %v758 = vpop.f32.mrb[0].mxu0
        %759 = vmatprep.mubr.f32.mxu0 0.0
        %760 = vmatmul.mubr.f32.gmra.mrb[0].mxu0 %v645
        %v761 = vpop.f32.mrb[0].mxu0
        %v762 = vadd.f32 0.0, %v761
        %v763 = vpop.f32.mrb[0].mxu0
        %764 = vmatprep.mubr.f32.mxu0 0.0
        %765 = vmatmul.mubr.f32.gmra.mrb[0].mxu0 %v648
        %v766 = vpop.f32.mrb[0].mxu0
        %v767 = vadd.f32 0.0, %v766
        %v768 = vpop.f32.mrb[0].mxu0
        %769 = vmatprep.mubr.f32.mxu0 0.0
        %770 = vmatmul.mubr.f32.gmra.mrb[0].mxu0 %v651
        %v771 = vpop.f32.mrb[0].mxu0
        %v772 = vadd.f32 0.0, %v771
        %v773 = vpop.f32.mrb[0].mxu0
        %774 = vmatprep.mubr.f32.mxu0 0.0
        %775 = vmatmul.mubr.f32.gmra.mrb[0].mxu0 %v654
        %v776 = vpop.f32.mrb[0].mxu0
        %v777 = vadd.f32 0.0, %v776
        %v778 = vpop.f32.mrb[0].mxu0
        %779 = vmatprep.mubr.f32.mxu0 0.0
        %780 = vmatmul.mubr.f32.gmra.mrb[0].mxu0 %v657
        %v781 = vpop.f32.mrb[0].mxu0
        %v782 = vadd.f32 0.0, %v781
        %v783 = vpop.f32.mrb[0].mxu0
        %784 = vmatprep.mubr.f32.mxu0 0.0
        %785 = vmatmul.mubr.f32.gmra.mrb[0].mxu0 %v660
        %v786 = vpop.f32.mrb[0].mxu0
        %v787 = vadd.f32 0.0, %v786
        %v788 = vpop.f32.mrb[0].mxu0
        %789 = vmatprep.mubr.f32.mxu0 0.0
        %790 = vmatmul.mubr.f32.gmra.mrb[0].mxu0 %v663
        %v791 = vpop.f32.mrb[0].mxu0
        %v792 = vadd.f32 0.0, %v791
        %v793 = vpop.f32.mrb[0].mxu0
        %794 = vmatprep.mubr.f32.mxu0 0.0
        %795 = vmatmul.mubr.f32.gmra.mrb[0].mxu0 %v666
        %v796 = vpop.f32.mrb[0].mxu0
        %v797 = vadd.f32 0.0, %v796
        %v798 = vpop.f32.mrb[0].mxu0
        %799 = vmatprep.mubr.f32.mxu0 0.0
        %800 = vmatmul.mubr.f32.gmra.mrb[0].mxu0 %v669
        %v801 = vpop.f32.mrb[0].mxu0
        %v802 = vadd.f32 0.0, %v801
        %v803 = vpop.f32.mrb[0].mxu0
        %804 = vmatprep.mubr.f32.mxu0 0.0
        %805 = vmatmul.mubr.f32.gmra.mrb[0].mxu0 %v672
        %v806 = vpop.f32.mrb[0].mxu0
        %v807 = vadd.f32 0.0, %v806
        %v808 = vpop.f32.mrb[0].mxu0
        %809 = vmatprep.mubr.f32.mxu0 0.0
        %810 = vmatmul.mubr.f32.gmra.mrb[0].mxu0 %v675
        %v811 = vpop.f32.mrb[0].mxu0
        %v812 = vadd.f32 0.0, %v811
        %v813 = vpop.f32.mrb[0].mxu0
        %814 = vdwg.mxu0
        %s815 = scalar_lea.vmem %s161, 16 [#allocation2]
        %v816 = vld [vmem:[%s815] sm:$0xff]
        %v817 = vld [vmem:[%s815 + $0x8] sm:$0xff]
        %v818 = vld [vmem:[%s815 + $0x10] sm:$0xff]
        %v819 = vld [vmem:[%s815 + $0x18] sm:$0xff]
        %v820 = vld [vmem:[%s815 + $0x20] sm:$0xff]
        %v821 = vld [vmem:[%s815 + $0x28] sm:$0xff]
        %v822 = vld [vmem:[%s815 + $0x30] sm:$0xff]
        %v823 = vld [vmem:[%s815 + $0x38] sm:$0xff]
        %v824 = vld [vmem:[%s815 + $0x40] sm:$0xff]
        %v825 = vld [vmem:[%s815 + $0x48] sm:$0xff]
        %v826 = vld [vmem:[%s815 + $0x50] sm:$0xff]
        %v827 = vld [vmem:[%s815 + $0x58] sm:$0xff]
        %v828 = vld [vmem:[%s815 + $0x60] sm:$0xff]
        %v829 = vld [vmem:[%s815 + $0x68] sm:$0xff]
        %v830 = vadd.f32 %v816, %v747
        %v831 = vadd.f32 %v817, %v752
        %v832 = vadd.f32 %v818, %v757
        %v833 = vadd.f32 %v819, %v762
        %v834 = vadd.f32 %v820, %v767
        %v835 = vadd.f32 %v821, %v772
        %v836 = vadd.f32 %v822, %v777
        %v837 = vadd.f32 %v823, %v782
        %v838 = vadd.f32 %v824, %v787
        %v839 = vadd.f32 %v825, %v792
        %v840 = vadd.f32 %v826, %v797
        %v841 = vadd.f32 %v827, %v802
        %v842 = vadd.f32 %v828, %v807
        %v843 = vadd.f32 %v829, %v812
        %844 = vst [vmem:[%s815] sm:$0xff] %v830
        %845 = vst [vmem:[%s815 + $0x8] sm:$0xff] %v831
        %846 = vst [vmem:[%s815 + $0x10] sm:$0xff] %v832
        %847 = vst [vmem:[%s815 + $0x18] sm:$0xff] %v833
        %848 = vst [vmem:[%s815 + $0x20] sm:$0xff] %v834
        %849 = vst [vmem:[%s815 + $0x28] sm:$0xff] %v835
        %850 = vst [vmem:[%s815 + $0x30] sm:$0xff] %v836
        %851 = vst [vmem:[%s815 + $0x38] sm:$0xff] %v837
        %852 = vst [vmem:[%s815 + $0x40] sm:$0xff] %v838
        %853 = vst [vmem:[%s815 + $0x48] sm:$0xff] %v839
        %854 = vst [vmem:[%s815 + $0x50] sm:$0xff] %v840
        %855 = vst [vmem:[%s815 + $0x58] sm:$0xff] %v841
        %856 = vst [vmem:[%s815 + $0x60] sm:$0xff] %v842
        %857 = vst [vmem:[%s815 + $0x68] sm:$0xff] %v843
        %s858 = sand.u32 %s87, 1
        %s859 = scalar_lea.sflag [#allocation3], %s858
        %s860 = sand.u32 %s87, 1
        %s861 = smul.addr %s860, 128
        %s862 = scalar_lea.vmem [#allocation2], %s861
        // Predicated region
        $region29: #{tpu_custom_call.1} parent=27 // pred_check
          %p863 = pneg %p97
        $region30: #{tpu_custom_call.1} parent=27 // pred_check_branch
          %865 = sbr.rel (%p863) target = $region32
        $region31: #{tpu_custom_call.1} parent=27 // pred_region
          %s866 = smul.u32 2, %s21
          %s868 = ssub.s32 2048, 2048
          %869 = vsyncadd %s859, %s868
          %s870 = smul.addr %s20, 16
          %s871 = sadd.s32 %s866, %s870
          %s872 = smul.addr %s871, 128
          %s873 = scalar_lea.hbm %s2, %s872
          %s874 = sshll.u32 %s862, 4
          %s875 = int_to_ptr.vmem [resolvable:$true] %s874
          %880 = dma.vmem_to_hbm [thread:$0]  %s875, 2048, %s873, %s859, 128, 128, 8
        $region32: #{tpu_custom_call.1} parent=27 // pred_fallthru
          _
      $region28: #{tpu_custom_call.1} parent=5 // pred_fallthru
        _
      %p881 = scmp.le.s32.totalorder 2, %s11
      // Predicated region
      $region33: #{tpu_custom_call.1} parent=5 // pred_check
        %p882 = pneg %p881
      $region34: #{tpu_custom_call.1} parent=5 // pred_check_branch
        %884 = sbr.rel (%p882) target = $region36
      $region35: #{tpu_custom_call.1} parent=5 // pred_region
        %s885 = ssub.s32 %s11, 2
        // Predicated region
        $region37: #{tpu_custom_call.1} parent=35 // pred_check
          %p886 = pneg %p103
        $region38: #{tpu_custom_call.1} parent=35 // pred_check_branch
          %888 = sbr.rel (%p886) target = $region40
        $region39: #{tpu_custom_call.1} parent=35 // pred_region
          %s889 = sand.u32 %s88, 1
          %s890 = scalar_lea.sflag [#allocation3], %s889
          %s891 = sand.u32 %s88, 1
          %s892 = smul.addr %s891, 128
          %s893 = scalar_lea.vmem [#allocation2], %s892
          %894 = dma.done %s890, 2048
        $region40: #{tpu_custom_call.1} parent=35 // pred_fallthru
          _
      $region36: #{tpu_custom_call.1} parent=5 // pred_fallthru
        _
    $region6: #{tpu_custom_call.1} parent=1 // loop_footer
      %s15 = sadd.s32 1, %s11
    $region7: #{tpu_custom_call.1} parent=1 // loop_footer_branch
      %10 = sbr.rel target = $region3
    $region8: #{tpu_custom_call.1} parent=1 // loop_exit
      _
    %895 = vsyncpa [#allocation3], 1
    %s896 = scalar_lea.sflag [#allocation3], 1
    %897 = vsyncpa %s896, 1

// kernel: tpu_custom_call.1
$region0: #{tpu_custom_call.1}
  #allocation0 [shape = 'u32[]', space=smem, size = 0x4, offset = 0x4, fixed_abs, tag = 'smem constant byte address 0x4 - core index']
  #allocation1 [shape = 'u32[144,128]{1,0:T(1,128)}', space=vmem, size = 0x12000, scoped, tag = 'internal scratch']
  %s0 = inlined_call_operand.vmem [shape: f32[2,8,16,4], index: 0, kind: input, shape index: {}]
  %s1 = inlined_call_operand.vmem [shape: f32[3,4,128], index: 1, kind: input, shape index: {}]
  %s2 = inlined_call_operand.hbm [shape: f32[2,8,16,128], index: 2, kind: output, shape index: {}]
  %s3 = sld [smem:[#allocation0]]
  $region41: #{tpu_custom_call.1} parent=0
    _
  %s5 = ssub.s32 1, %s3
  %s6 = scalar_select 0, %s5, %s3
  $region1: #{tpu_custom_call.1} parent=0
    #allocation2 [shape = 'u8[131072]{0}', space=vmem, size = 0x20000, scoped, tag = 'output window, operand 0']
    #allocation3 [shape = 's32[2]{0}', space=sflag, size = 0x8, scoped, tag = 'scoped memory for tpu_custom_call.1']
    %7 = vsyncpa [#allocation3], 0
    %s8 = scalar_lea.sflag [#allocation3], 1
    %9 = vsyncpa %s8, 0
    loop: start=0, step=1, limit=4
    $region2: #{tpu_custom_call.1} parent=1 // loop_pre_header
      _
    $region3: #{tpu_custom_call.1} parent=1 // loop_header
      %s11 = sphi 0, %s15
      %p12 = scmp.ge.s32.totalorder %s11, 4
      %s18 = sphi 0, %s30
      %s19 = sphi 0, %s26
      %s20 = sphi 0, %s18
      %s21 = sphi 0, %s19
      %s22 = sphi 0, %s20
      %s23 = sphi 0, %s21
      %s35 = sphi 0, %s37
      %s38 = sphi 0, %s35
      %s39 = sphi 0, %s38
      %s55 = sphi 0, %s39
      %s59 = sphi 0, %s59
      %s61 = sphi 0, %s59
      %s62 = sphi 0, %s61
      %s76 = sphi 0, %s62
      %s84 = sphi 0, %s86
      %s87 = sphi 0, %s84
      %s88 = sphi 0, %s87
      %s104 = sphi 0, %s88
    $region4: #{tpu_custom_call.1} parent=1 // loop_header_branch
      %14 = sbr.rel (%p12) target = $region8
    $region5: #{tpu_custom_call.1} parent=1 // loop_body
      %s16 = ssub.s32 %s11, 1
      %s17 = ssub.s32 %s11, 2
      %s24 = sadd.s32 1, %s19
      %p25 = scmp.ge.s32.totalorder %s24, 1
      %s26 = scalar_select %p25, 0, %s24
      %s27 = sadd.s32 1, %s18
      %s28 = scalar_select %p25, %s27, %s18
      %p29 = scmp.ge.s32.totalorder %s28, 2
      %s30 = scalar_select %p29, 0, %s28
      %s31 = ssub.s32 %s18, %s30
      %s32 = ssub.s32 %s19, %s26
      %s33 = sor.u32 %s31, %s32
      %p34 = scmp.eq.s32.totalorder %s33, 0
      %s36 = sadd.s32 %s35, 1
      %s37 = scalar_select %p34, %s35, %s36
      %p40 = pneg %p34
      %p41 = scmp.eq.s32.totalorder %s11, 1
      %p42 = por %p40, %p41
      %p43 = scmp.ne.s32.totalorder %s35, %s38
      %p44 = scmp.eq.s32.totalorder %s11, 0
      %p45 = por %p43, %p44
      %p46 = scmp.ne.s32.totalorder %s35, %s38
      %p47 = scmp.eq.s32.totalorder %s16, 1
      %p48 = por %p46, %p47
      %p49 = scmp.ne.s32.totalorder %s38, %s39
      %p50 = scmp.eq.s32.totalorder %s16, 0
      %p51 = por %p49, %p50
      %p52 = scmp.ne.s32.totalorder %s38, %s39
      %p53 = scmp.eq.s32.totalorder %s17, 1
      %p54 = por %p52, %p53
      %p56 = scmp.ne.s32.totalorder %s39, %s55
      %p57 = scmp.eq.s32.totalorder %s17, 0
      %p58 = por %p56, %p57
      %s60 = sadd.s32 %s59, 1
      %p63 = scmp.eq.s32.totalorder %s11, 1
      %p64 = scmp.ne.s32.totalorder %s59, %s61
      %p65 = scmp.eq.s32.totalorder %s11, 0
      %p66 = por %p64, %p65
      %p67 = scmp.ne.s32.totalorder %s59, %s61
      %p68 = scmp.eq.s32.totalorder %s16, 1
      %p69 = por %p67, %p68
      %p70 = scmp.ne.s32.totalorder %s61, %s62
      %p71 = scmp.eq.s32.totalorder %s16, 0
      %p72 = por %p70, %p71
      %p73 = scmp.ne.s32.totalorder %s61, %s62
      %p74 = scmp.eq.s32.totalorder %s17, 1
      %p75 = por %p73, %p74
      %p77 = scmp.ne.s32.totalorder %s62, %s76
      %p78 = scmp.eq.s32.totalorder %s17, 0
      %p79 = por %p77, %p78
      %s80 = ssub.s32 %s18, %s30
      %s81 = ssub.s32 %s19, %s26
      %s82 = sor.u32 %s80, %s81
      %p83 = scmp.eq.s32.totalorder %s82, 0
      %s85 = sadd.s32 %s84, 1
      %s86 = scalar_select %p83, %s84, %s85
      %p89 = pneg %p83
      %p90 = scmp.eq.s32.totalorder %s11, 1
      %p91 = por %p89, %p90
      %p92 = scmp.ne.s32.totalorder %s84, %s87
      %p93 = scmp.eq.s32.totalorder %s11, 0
      %p94 = por %p92, %p93
      %p95 = scmp.ne.s32.totalorder %s84, %s87
      %p96 = scmp.eq.s32.totalorder %s16, 1
      %p97 = por %p95, %p96
      %p98 = scmp.ne.s32.totalorder %s87, %s88
      %p99 = scmp.eq.s32.totalorder %s16, 0
      %p100 = por %p98, %p99
      %p101 = scmp.ne.s32.totalorder %s87, %s88
      %p102 = scmp.eq.s32.totalorder %s17, 1
      %p103 = por %p101, %p102
      %p105 = scmp.ne.s32.totalorder %s88, %s104
      %p106 = scmp.eq.s32.totalorder %s17, 0
      %p107 = por %p105, %p106
      %p108 = scmp.le.s32.totalorder 1, %s11
      %p109 = scmp.lt.s32.totalorder %s11, 3
      %p110 = pnand %p108, %p109
      %p111 = pneg %p110
      // Predicated region
      $region9: #{tpu_custom_call.1} parent=5 // pred_check
        _
      $region10: #{tpu_custom_call.1} parent=5 // pred_check_branch
        %113 = sbr.rel (%p110) target = $region12
      $region11: #{tpu_custom_call.1} parent=5 // pred_region
        %s114 = ssub.s32 %s11, 1
        // Predicated region
        $region13: #{tpu_custom_call.1} parent=11 // pred_check
          %p115 = pneg %p72
        $region14: #{tpu_custom_call.1} parent=11 // pred_check_branch
          %117 = sbr.rel (%p115) target = $region16
        $region15: #{tpu_custom_call.1} parent=11 // pred_region
          _
        $region16: #{tpu_custom_call.1} parent=11 // pred_fallthru
          _
      $region12: #{tpu_custom_call.1} parent=5 // pred_fallthru
        _
      %p118 = scmp.lt.s32.totalorder %s11, 2
      // Predicated region
      $region17: #{tpu_custom_call.1} parent=5 // pred_check
        %p119 = pneg %p118
      $region18: #{tpu_custom_call.1} parent=5 // pred_check_branch
        %121 = sbr.rel (%p119) target = $region20
      $region19: #{tpu_custom_call.1} parent=5 // pred_region
        // Predicated region
        $region21: #{tpu_custom_call.1} parent=19 // pred_check
          %p122 = pneg %p45
        $region22: #{tpu_custom_call.1} parent=19 // pred_check_branch
          %124 = sbr.rel (%p122) target = $region24
        $region23: #{tpu_custom_call.1} parent=19 // pred_region
          %s125 = smul.u32 2, %s19
          %p126 = scmp.lt.s32.totalorder %s18, 1
          %s127 = scalar_select %p126, %s18, 1
          %p128 = scmp.lt.s32.totalorder %s125, 1
          %s129 = scalar_select %p128, %s125, 1
          %s130 = smul.addr %s127, 16
          %s131 = sadd.s32 %s129, %s130
          %s132 = smul.addr %s131, 8
          %s133 = scalar_lea.vmem %s0, %s132
          %s134 = smul.u32 2, %s19
        $region24: #{tpu_custom_call.1} parent=19 // pred_fallthru
          _
      $region20: #{tpu_custom_call.1} parent=5 // pred_fallthru
        _
      %p135 = scmp.le.s32.totalorder 1, %s11
      %p136 = scmp.lt.s32.totalorder %s11, 3
      %p137 = pnand %p135, %p136
      %p138 = pneg %p137
      // Predicated region
      $region25: #{tpu_custom_call.1} parent=5 // pred_check
        _
      $region26: #{tpu_custom_call.1} parent=5 // pred_check_branch
        %140 = sbr.rel (%p137) target = $region28
      $region27: #{tpu_custom_call.1} parent=5 // pred_region
        %s141 = ssub.s32 %s11, 1
        %s142 = smul.u32 2, %s21
        %p143 = scmp.lt.s32.totalorder %s20, 1
        %s144 = scalar_select %p143, %s20, 1
        %p145 = scmp.lt.s32.totalorder %s142, 1
        %s146 = scalar_select %p145, %s142, 1
        %s147 = smul.addr %s144, 16
        %s148 = sadd.s32 %s146, %s147
        %s149 = smul.addr %s148, 8
        %s150 = scalar_lea.vmem %s0, %s149
        %p151 = pneg %p51
        %p152 = pneg %p48
        %p153 = pneg %p72
        %p154 = pneg %p69
        %p155 = pneg %p100
        %p156 = pneg %p97
        %s157 = sand.u32 %s87, 1
        %s158 = scalar_lea.sflag [#allocation3], %s157
        %s159 = sand.u32 %s87, 1
        %s160 = smul.addr %s159, 128
        %s161 = scalar_lea.vmem [#allocation2], %s160
        %s162 = smul.u32 2, %s21
        %p163 = scmp.lt.s32.totalorder %s20, 1
        %s164 = scalar_select %p163, %s20, 1
        %p165 = scmp.lt.s32.totalorder %s162, 1
        %s166 = scalar_select %p165, %s162, 1
        %s167 = smul.addr %s164, 16
        %s168 = sadd.s32 %s166, %s167
        %s169 = smul.addr %s168, 8
        %s170 = scalar_lea.vmem %s0, %s169
        %s171 = smul.u32 2, %s21
        %s172 = smul.u32 2, %s21
        %v173 = vld [vmem:[%s170] sm:$0xff]
        %v174 = vld [vmem:[%s170 + $0x8] sm:$0xff]
        %v175 = vld [vmem:[%s170 + $0x10] sm:$0xff]
        %v176 = vld [vmem:[%s170 + $0x18] sm:$0xff]
        %v177 = vld [vmem:[%s170 + $0x20] sm:$0xff]
        %v178 = vld [vmem:[%s170 + $0x28] sm:$0xff]
        %v179 = vld [vmem:[%s170 + $0x30] sm:$0xff]
        %v180 = vld [vmem:[%s170 + $0x38] sm:$0xff]
        %v181 = vld [vmem:[%s170 + $0x40] sm:$0xff]
        %v182 = vld [vmem:[%s170 + $0x48] sm:$0xff]
        %v183 = vld [vmem:[%s170 + $0x50] sm:$0xff]
        %v184 = vld [vmem:[%s170 + $0x58] sm:$0xff]
        %v185 = vld [vmem:[%s170 + $0x60] sm:$0xff]
        %v186 = vld [vmem:[%s170 + $0x68] sm:$0xff]
        %v187 = vld [vmem:[%s170 + $0x70] sm:$0xff]
        %v188 = vld [vmem:[%s170 + $0x78] sm:$0xff]
        %s189 = scalar_lea.vmem %s1, 8
        %v190 = vld [vmem:[%s189] sm:$0xf]
        %vm191 = vcmask 31744
        %v193 = vsel %vm191, %v173, 0
        %v196 = vsel %vm191, %v174, 0
        %v199 = vsel %vm191, %v175, 0
        %v202 = vsel %vm191, %v176, 0
        %v205 = vsel %vm191, %v177, 0
        %v208 = vsel %vm191, %v178, 0
        %v211 = vsel %vm191, %v179, 0
        %v214 = vsel %vm191, %v180, 0
        %v217 = vsel %vm191, %v181, 0
        %v220 = vsel %vm191, %v182, 0
        %v223 = vsel %vm191, %v183, 0
        %v226 = vsel %vm191, %v184, 0
        %v229 = vsel %vm191, %v185, 0
        %v232 = vsel %vm191, %v186, 0
        %v235 = vsel %vm191, %v187, 0
        %v238 = vsel %vm191, %v188, 0
        %vm240 = vcmask 1043456
        %v242 = vsel %vm240, %v190, 0
        %244 = vmatprep.subr.mxu0 0.0
        %245 = vmatpush1.msra.mxu0 %v242
        %246 = vmatprep.subr.mxu0 0.0
        %247 = vmatpush1.msra.mxu0 0.0
        %248 = vmatprep.subr.mxu0 0.0
        %249 = vmatpush1.msra.mxu0 0.0
        %250 = vmatprep.subr.mxu0 0.0
        %251 = vmatpush1.msra.mxu0 0.0
        %252 = vmatprep.subr.mxu0 0.0
        %253 = vmatpush1.msra.mxu0 0.0
        %254 = vmatprep.subr.mxu0 0.0
        %255 = vmatpush1.msra.mxu0 0.0
        %256 = vmatprep.subr.mxu0 0.0
        %257 = vmatpush1.msra.mxu0 0.0
        %258 = vmatprep.subr.mxu0 0.0
        %259 = vmatpush1.msra.mxu0 0.0
        %260 = vmatprep.subr.mxu0 0.0
        %261 = vmatpush1.msra.mxu0 0.0
        %262 = vmatprep.subr.mxu0 0.0
        %263 = vmatpush1.msra.mxu0 0.0
        %264 = vmatprep.subr.mxu0 0.0
        %265 = vmatpush1.msra.mxu0 0.0
        %266 = vmatprep.subr.mxu0 0.0
        %267 = vmatpush1.msra.mxu0 0.0
        %268 = vmatprep.subr.mxu0 0.0
        %269 = vmatpush1.msra.mxu0 0.0
        %270 = vmatprep.subr.mxu0 0.0
        %271 = vmatpush1.msra.mxu0 0.0
        %272 = vmatprep.subr.mxu0 0.0
        %273 = vmatpush1.msra.mxu0 0.0
        %274 = vmatprep.subr.mxu0 0.0
        %275 = vmatpush1.msra.mxu0 0.0
        %276 = vmatprep.subr.mxu0 0.0
        %277 = vmatpush1.msra.mxu0 0.0
        %278 = vmatprep.subr.mxu0 0.0
        %279 = vmatpush1.msra.mxu0 0.0
        %280 = vmatprep.subr.mxu0 0.0
        %281 = vmatpush1.msra.mxu0 0.0
        %282 = vmatprep.subr.mxu0 0.0
        %283 = vmatpush1.msra.mxu0 0.0
        %284 = vmatprep.subr.mxu0 0.0
        %285 = vmatpush1.msra.mxu0 0.0
        %286 = vmatprep.subr.mxu0 0.0
        %287 = vmatpush1.msra.mxu0 0.0
        %288 = vmatprep.subr.mxu0 0.0
        %289 = vmatpush1.msra.mxu0 0.0
        %290 = vmatprep.subr.mxu0 0.0
        %291 = vmatpush1.msra.mxu0 0.0
        %292 = vmatprep.subr.mxu0 0.0
        %293 = vmatpush1.msra.mxu0 0.0
        %294 = vmatprep.subr.mxu0 0.0
        %295 = vmatpush1.msra.mxu0 0.0
        %296 = vmatprep.subr.mxu0 0.0
        %297 = vmatpush1.msra.mxu0 0.0
        %298 = vmatprep.subr.mxu0 0.0
        %299 = vmatpush1.msra.mxu0 0.0
        %300 = vmatprep.subr.mxu0 0.0
        %301 = vmatpush1.msra.mxu0 0.0
        %302 = vmatprep.subr.mxu0 0.0
        %303 = vmatpush1.msra.mxu0 0.0
        %304 = vmatprep.subr.mxu0 0.0
        %305 = vmatpush1.msra.mxu0 0.0
        %306 = vmatprep.subr.mxu0 0.0
        %307 = vmatpush1.msra.mxu0 0.0
        %308 = vmatprep.mubr.f32.mxu0 0.0
        %309 = vmatmul.mubr.f32.gmra.mrb[0].mxu0 %v193
        %v310 = vpop.f32.mrb[0].mxu0
        %v311 = vadd.f32 0.0, %v310
        %v312 = vpop.f32.mrb[0].mxu0
        %313 = vmatprep.mubr.f32.mxu0 0.0
        %314 = vmatmul.mubr.f32.gmra.mrb[0].mxu0 %v196
        %v315 = vpop.f32.mrb[0].mxu0
        %v316 = vadd.f32 0.0, %v315
        %v317 = vpop.f32.mrb[0].mxu0
        %318 = vmatprep.mubr.f32.mxu0 0.0
        %319 = vmatmul.mubr.f32.gmra.mrb[0].mxu0 %v199
        %v320 = vpop.f32.mrb[0].mxu0
        %v321 = vadd.f32 0.0, %v320
        %v322 = vpop.f32.mrb[0].mxu0
        %323 = vmatprep.mubr.f32.mxu0 0.0
        %324 = vmatmul.mubr.f32.gmra.mrb[0].mxu0 %v202
        %v325 = vpop.f32.mrb[0].mxu0
        %v326 = vadd.f32 0.0, %v325
        %v327 = vpop.f32.mrb[0].mxu0
        %328 = vmatprep.mubr.f32.mxu0 0.0
        %329 = vmatmul.mubr.f32.gmra.mrb[0].mxu0 %v205
        %v330 = vpop.f32.mrb[0].mxu0
        %v331 = vadd.f32 0.0, %v330
        %v332 = vpop.f32.mrb[0].mxu0
        %333 = vmatprep.mubr.f32.mxu0 0.0
        %334 = vmatmul.mubr.f32.gmra.mrb[0].mxu0 %v208
        %v335 = vpop.f32.mrb[0].mxu0
        %v336 = vadd.f32 0.0, %v335
        %v337 = vpop.f32.mrb[0].mxu0
        %338 = vmatprep.mubr.f32.mxu0 0.0
        %339 = vmatmul.mubr.f32.gmra.mrb[0].mxu0 %v211
        %v340 = vpop.f32.mrb[0].mxu0
        %v341 = vadd.f32 0.0, %v340
        %v342 = vpop.f32.mrb[0].mxu0
        %343 = vmatprep.mubr.f32.mxu0 0.0
        %344 = vmatmul.mubr.f32.gmra.mrb[0].mxu0 %v214
        %v345 = vpop.f32.mrb[0].mxu0
        %v346 = vadd.f32 0.0, %v345
        %v347 = vpop.f32.mrb[0].mxu0
        %348 = vmatprep.mubr.f32.mxu0 0.0
        %349 = vmatmul.mubr.f32.gmra.mrb[0].mxu0 %v217
        %v350 = vpop.f32.mrb[0].mxu0
        %v351 = vadd.f32 0.0, %v350
        %v352 = vpop.f32.mrb[0].mxu0
        %353 = vmatprep.mubr.f32.mxu0 0.0
        %354 = vmatmul.mubr.f32.gmra.mrb[0].mxu0 %v220
        %v355 = vpop.f32.mrb[0].mxu0
        %v356 = vadd.f32 0.0, %v355
        %v357 = vpop.f32.mrb[0].mxu0
        %358 = vmatprep.mubr.f32.mxu0 0.0
        %359 = vmatmul.mubr.f32.gmra.mrb[0].mxu0 %v223
        %v360 = vpop.f32.mrb[0].mxu0
        %v361 = vadd.f32 0.0, %v360
        %v362 = vpop.f32.mrb[0].mxu0
        %363 = vmatprep.mubr.f32.mxu0 0.0
        %364 = vmatmul.mubr.f32.gmra.mrb[0].mxu0 %v226
        %v365 = vpop.f32.mrb[0].mxu0
        %v366 = vadd.f32 0.0, %v365
        %v367 = vpop.f32.mrb[0].mxu0
        %368 = vmatprep.mubr.f32.mxu0 0.0
        %369 = vmatmul.mubr.f32.gmra.mrb[0].mxu0 %v229
        %v370 = vpop.f32.mrb[0].mxu0
        %v371 = vadd.f32 0.0, %v370
        %v372 = vpop.f32.mrb[0].mxu0
        %373 = vmatprep.mubr.f32.mxu0 0.0
        %374 = vmatmul.mubr.f32.gmra.mrb[0].mxu0 %v232
        %v375 = vpop.f32.mrb[0].mxu0
        %v376 = vadd.f32 0.0, %v375
        %v377 = vpop.f32.mrb[0].mxu0
        %378 = vmatprep.mubr.f32.mxu0 0.0
        %379 = vmatmul.mubr.f32.gmra.mrb[0].mxu0 %v235
        %v380 = vpop.f32.mrb[0].mxu0
        %v381 = vadd.f32 0.0, %v380
        %v382 = vpop.f32.mrb[0].mxu0
        %383 = vmatprep.mubr.f32.mxu0 0.0
        %384 = vmatmul.mubr.f32.gmra.mrb[0].mxu0 %v238
        %v385 = vpop.f32.mrb[0].mxu0
        %v386 = vadd.f32 0.0, %v385
        %v387 = vpop.f32.mrb[0].mxu0
        %388 = vdwg.mxu0
        %389 = vst [vmem:[%s161] sm:$0xff] %v311
        %390 = vst [vmem:[%s161 + $0x8] sm:$0xff] %v316
        %391 = vst [vmem:[%s161 + $0x10] sm:$0xff] %v321
        %392 = vst [vmem:[%s161 + $0x18] sm:$0xff] %v326
        %393 = vst [vmem:[%s161 + $0x20] sm:$0xff] %v331
        %394 = vst [vmem:[%s161 + $0x28] sm:$0xff] %v336
        %395 = vst [vmem:[%s161 + $0x30] sm:$0xff] %v341
        %396 = vst [vmem:[%s161 + $0x38] sm:$0xff] %v346
        %397 = vst [vmem:[%s161 + $0x40] sm:$0xff] %v351
        %398 = vst [vmem:[%s161 + $0x48] sm:$0xff] %v356
        %399 = vst [vmem:[%s161 + $0x50] sm:$0xff] %v361
        %400 = vst [vmem:[%s161 + $0x58] sm:$0xff] %v366
        %401 = vst [vmem:[%s161 + $0x60] sm:$0xff] %v371
        %402 = vst [vmem:[%s161 + $0x68] sm:$0xff] %v376
        %403 = vst [vmem:[%s161 + $0x70] sm:$0xff] %v381
        %404 = vst [vmem:[%s161 + $0x78] sm:$0xff] %v386
        %v405 = vld [vmem:[%s170] sm:$0xff]
        %v406 = vld [vmem:[%s170 + $0x8] sm:$0xff]
        %v407 = vld [vmem:[%s170 + $0x10] sm:$0xff]
        %v408 = vld [vmem:[%s170 + $0x18] sm:$0xff]
        %v409 = vld [vmem:[%s170 + $0x20] sm:$0xff]
        %v410 = vld [vmem:[%s170 + $0x28] sm:$0xff]
        %v411 = vld [vmem:[%s170 + $0x30] sm:$0xff]
        %v412 = vld [vmem:[%s170 + $0x38] sm:$0xff]
        %v413 = vld [vmem:[%s170 + $0x40] sm:$0xff]
        %v414 = vld [vmem:[%s170 + $0x48] sm:$0xff]
        %v415 = vld [vmem:[%s170 + $0x50] sm:$0xff]
        %v416 = vld [vmem:[%s170 + $0x58] sm:$0xff]
        %v417 = vld [vmem:[%s1] sm:$0xf]
        %v419 = vsel %vm191, %v405, 0
        %v422 = vsel %vm191, %v406, 0
        %v425 = vsel %vm191, %v407, 0
        %v428 = vsel %vm191, %v408, 0
        %v431 = vsel %vm191, %v409, 0
        %v434 = vsel %vm191, %v410, 0
        %v437 = vsel %vm191, %v411, 0
        %v440 = vsel %vm191, %v412, 0
        %v443 = vsel %vm191, %v413, 0
        %v446 = vsel %vm191, %v414, 0
        %v449 = vsel %vm191, %v415, 0
        %v452 = vsel %vm191, %v416, 0
        %v455 = vsel %vm240, %v417, 0
        %457 = vmatprep.subr.mxu0 0.0
        %458 = vmatpush1.msra.mxu0 %v455
        %459 = vmatprep.subr.mxu0 0.0
        %460 = vmatpush1.msra.mxu0 0.0
        %461 = vmatprep.subr.mxu0 0.0
        %462 = vmatpush1.msra.mxu0 0.0
        %463 = vmatprep.subr.mxu0 0.0
        %464 = vmatpush1.msra.mxu0 0.0
        %465 = vmatprep.subr.mxu0 0.0
        %466 = vmatpush1.msra.mxu0 0.0
        %467 = vmatprep.subr.mxu0 0.0
        %468 = vmatpush1.msra.mxu0 0.0
        %469 = vmatprep.subr.mxu0 0.0
        %470 = vmatpush1.msra.mxu0 0.0
        %471 = vmatprep.subr.mxu0 0.0
        %472 = vmatpush1.msra.mxu0 0.0
        %473 = vmatprep.subr.mxu0 0.0
        %474 = vmatpush1.msra.mxu0 0.0
        %475 = vmatprep.subr.mxu0 0.0
        %476 = vmatpush1.msra.mxu0 0.0
        %477 = vmatprep.subr.mxu0 0.0
        %478 = vmatpush1.msra.mxu0 0.0
        %479 = vmatprep.subr.mxu0 0.0
        %480 = vmatpush1.msra.mxu0 0.0
        %481 = vmatprep.subr.mxu0 0.0
        %482 = vmatpush1.msra.mxu0 0.0
        %483 = vmatprep.subr.mxu0 0.0
        %484 = vmatpush1.msra.mxu0 0.0
        %485 = vmatprep.subr.mxu0 0.0
        %486 = vmatpush1.msra.mxu0 0.0
        %487 = vmatprep.subr.mxu0 0.0
        %488 = vmatpush1.msra.mxu0 0.0
        %489 = vmatprep.subr.mxu0 0.0
        %490 = vmatpush1.msra.mxu0 0.0
        %491 = vmatprep.subr.mxu0 0.0
        %492 = vmatpush1.msra.mxu0 0.0
        %493 = vmatprep.subr.mxu0 0.0
        %494 = vmatpush1.msra.mxu0 0.0
        %495 = vmatprep.subr.mxu0 0.0
        %496 = vmatpush1.msra.mxu0 0.0
        %497 = vmatprep.subr.mxu0 0.0
        %498 = vmatpush1.msra.mxu0 0.0
        %499 = vmatprep.subr.mxu0 0.0
        %500 = vmatpush1.msra.mxu0 0.0
        %501 = vmatprep.subr.mxu0 0.0
        %502 = vmatpush1.msra.mxu0 0.0
        %503 = vmatprep.subr.mxu0 0.0
        %504 = vmatpush1.msra.mxu0 0.0
        %505 = vmatprep.subr.mxu0 0.0
        %506 = vmatpush1.msra.mxu0 0.0
        %507 = vmatprep.subr.mxu0 0.0
        %508 = vmatpush1.msra.mxu0 0.0
        %509 = vmatprep.subr.mxu0 0.0
        %510 = vmatpush1.msra.mxu0 0.0
        %511 = vmatprep.subr.mxu0 0.0
        %512 = vmatpush1.msra.mxu0 0.0
        %513 = vmatprep.subr.mxu0 0.0
        %514 = vmatpush1.msra.mxu0 0.0
        %515 = vmatprep.subr.mxu0 0.0
        %516 = vmatpush1.msra.mxu0 0.0
        %517 = vmatprep.subr.mxu0 0.0
        %518 = vmatpush1.msra.mxu0 0.0
        %519 = vmatprep.subr.mxu0 0.0
        %520 = vmatpush1.msra.mxu0 0.0
        %521 = vmatprep.mubr.f32.mxu0 0.0
        %522 = vmatmul.mubr.f32.gmra.mrb[0].mxu0 %v419
        %v523 = vpop.f32.mrb[0].mxu0
        %v524 = vadd.f32 0.0, %v523
        %v525 = vpop.f32.mrb[0].mxu0
        %526 = vmatprep.mubr.f32.mxu0 0.0
        %527 = vmatmul.mubr.f32.gmra.mrb[0].mxu0 %v422
        %v528 = vpop.f32.mrb[0].mxu0
        %v529 = vadd.f32 0.0, %v528
        %v530 = vpop.f32.mrb[0].mxu0
        %531 = vmatprep.mubr.f32.mxu0 0.0
        %532 = vmatmul.mubr.f32.gmra.mrb[0].mxu0 %v425
        %v533 = vpop.f32.mrb[0].mxu0
        %v534 = vadd.f32 0.0, %v533
        %v535 = vpop.f32.mrb[0].mxu0
        %536 = vmatprep.mubr.f32.mxu0 0.0
        %537 = vmatmul.mubr.f32.gmra.mrb[0].mxu0 %v428
        %v538 = vpop.f32.mrb[0].mxu0
        %v539 = vadd.f32 0.0, %v538
        %v540 = vpop.f32.mrb[0].mxu0
        %541 = vmatprep.mubr.f32.mxu0 0.0
        %542 = vmatmul.mubr.f32.gmra.mrb[0].mxu0 %v431
        %v543 = vpop.f32.mrb[0].mxu0
        %v544 = vadd.f32 0.0, %v543
        %v545 = vpop.f32.mrb[0].mxu0
        %546 = vmatprep.mubr.f32.mxu0 0.0
        %547 = vmatmul.mubr.f32.gmra.mrb[0].mxu0 %v434
        %v548 = vpop.f32.mrb[0].mxu0
        %v549 = vadd.f32 0.0, %v548
        %v550 = vpop.f32.mrb[0].mxu0
        %551 = vmatprep.mubr.f32.mxu0 0.0
        %552 = vmatmul.mubr.f32.gmra.mrb[0].mxu0 %v437
        %v553 = vpop.f32.mrb[0].mxu0
        %v554 = vadd.f32 0.0, %v553
        %v555 = vpop.f32.mrb[0].mxu0
        %556 = vmatprep.mubr.f32.mxu0 0.0
        %557 = vmatmul.mubr.f32.gmra.mrb[0].mxu0 %v440
        %v558 = vpop.f32.mrb[0].mxu0
        %v559 = vadd.f32 0.0, %v558
        %v560 = vpop.f32.mrb[0].mxu0
        %561 = vmatprep.mubr.f32.mxu0 0.0
        %562 = vmatmul.mubr.f32.gmra.mrb[0].mxu0 %v443
        %v563 = vpop.f32.mrb[0].mxu0
        %v564 = vadd.f32 0.0, %v563
        %v565 = vpop.f32.mrb[0].mxu0
        %566 = vmatprep.mubr.f32.mxu0 0.0
        %567 = vmatmul.mubr.f32.gmra.mrb[0].mxu0 %v446
        %v568 = vpop.f32.mrb[0].mxu0
        %v569 = vadd.f32 0.0, %v568
        %v570 = vpop.f32.mrb[0].mxu0
        %571 = vmatprep.mubr.f32.mxu0 0.0
        %572 = vmatmul.mubr.f32.gmra.mrb[0].mxu0 %v449
        %v573 = vpop.f32.mrb[0].mxu0
        %v574 = vadd.f32 0.0, %v573
        %v575 = vpop.f32.mrb[0].mxu0
        %576 = vmatprep.mubr.f32.mxu0 0.0
        %577 = vmatmul.mubr.f32.gmra.mrb[0].mxu0 %v452
        %v578 = vpop.f32.mrb[0].mxu0
        %v579 = vadd.f32 0.0, %v578
        %v580 = vpop.f32.mrb[0].mxu0
        %581 = vdwg.mxu0
        %s582 = scalar_lea.vmem %s161, 32 [#allocation2]
        %v583 = vld [vmem:[%s582] sm:$0xff]
        %v584 = vld [vmem:[%s582 + $0x8] sm:$0xff]
        %v585 = vld [vmem:[%s582 + $0x10] sm:$0xff]
        %v586 = vld [vmem:[%s582 + $0x18] sm:$0xff]
        %v587 = vld [vmem:[%s582 + $0x20] sm:$0xff]
        %v588 = vld [vmem:[%s582 + $0x28] sm:$0xff]
        %v589 = vld [vmem:[%s582 + $0x30] sm:$0xff]
        %v590 = vld [vmem:[%s582 + $0x38] sm:$0xff]
        %v591 = vld [vmem:[%s582 + $0x40] sm:$0xff]
        %v592 = vld [vmem:[%s582 + $0x48] sm:$0xff]
        %v593 = vld [vmem:[%s582 + $0x50] sm:$0xff]
        %v594 = vld [vmem:[%s582 + $0x58] sm:$0xff]
        %v595 = vadd.f32 %v583, %v524
        %v596 = vadd.f32 %v584, %v529
        %v597 = vadd.f32 %v585, %v534
        %v598 = vadd.f32 %v586, %v539
        %v599 = vadd.f32 %v587, %v544
        %v600 = vadd.f32 %v588, %v549
        %v601 = vadd.f32 %v589, %v554
        %v602 = vadd.f32 %v590, %v559
        %v603 = vadd.f32 %v591, %v564
        %v604 = vadd.f32 %v592, %v569
        %v605 = vadd.f32 %v593, %v574
        %v606 = vadd.f32 %v594, %v579
        %607 = vst [vmem:[%s582] sm:$0xff] %v595
        %608 = vst [vmem:[%s582 + $0x8] sm:$0xff] %v596
        %609 = vst [vmem:[%s582 + $0x10] sm:$0xff] %v597
        %610 = vst [vmem:[%s582 + $0x18] sm:$0xff] %v598
        %611 = vst [vmem:[%s582 + $0x20] sm:$0xff] %v599
        %612 = vst [vmem:[%s582 + $0x28] sm:$0xff] %v600
        %613 = vst [vmem:[%s582 + $0x30] sm:$0xff] %v601
        %614 = vst [vmem:[%s582 + $0x38] sm:$0xff] %v602
        %615 = vst [vmem:[%s582 + $0x40] sm:$0xff] %v603
        %616 = vst [vmem:[%s582 + $0x48] sm:$0xff] %v604
        %617 = vst [vmem:[%s582 + $0x50] sm:$0xff] %v605
        %618 = vst [vmem:[%s582 + $0x58] sm:$0xff] %v606
        %v619 = vld [vmem:[%s170] sm:$0xff]
        %v620 = vld [vmem:[%s170 + $0x8] sm:$0xff]
        %v621 = vld [vmem:[%s170 + $0x10] sm:$0xff]
        %v622 = vld [vmem:[%s170 + $0x18] sm:$0xff]
        %v623 = vld [vmem:[%s170 + $0x20] sm:$0xff]
        %v624 = vld [vmem:[%s170 + $0x28] sm:$0xff]
        %v625 = vld [vmem:[%s170 + $0x30] sm:$0xff]
        %v626 = vld [vmem:[%s170 + $0x38] sm:$0xff]
        %v627 = vld [vmem:[%s170 + $0x40] sm:$0xff]
        %v628 = vld [vmem:[%s170 + $0x48] sm:$0xff]
        %v629 = vld [vmem:[%s170 + $0x50] sm:$0xff]
        %v630 = vld [vmem:[%s170 + $0x58] sm:$0xff]
        %v631 = vld [vmem:[%s170 + $0x60] sm:$0xff]
        %v632 = vld [vmem:[%s170 + $0x68] sm:$0xff]
        %s633 = scalar_lea.vmem %s1, 4
        %v634 = vld [vmem:[%s633] sm:$0xf]
        %v636 = vsel %vm191, %v619, 0
        %v639 = vsel %vm191, %v620, 0
        %v642 = vsel %vm191, %v621, 0
        %v645 = vsel %vm191, %v622, 0
        %v648 = vsel %vm191, %v623, 0
        %v651 = vsel %vm191, %v624, 0
        %v654 = vsel %vm191, %v625, 0
        %v657 = vsel %vm191, %v626, 0
        %v660 = vsel %vm191, %v627, 0
        %v663 = vsel %vm191, %v628, 0
        %v666 = vsel %vm191, %v629, 0
        %v669 = vsel %vm191, %v630, 0
        %v672 = vsel %vm191, %v631, 0
        %v675 = vsel %vm191, %v632, 0
        %v678 = vsel %vm240, %v634, 0
        %680 = vmatprep.subr.mxu0 0.0
        %681 = vmatpush1.msra.mxu0 %v678
        %682 = vmatprep.subr.mxu0 0.0
        %683 = vmatpush1.msra.mxu0 0.0
        %684 = vmatprep.subr.mxu0 0.0
        %685 = vmatpush1.msra.mxu0 0.0
        %686 = vmatprep.subr.mxu0 0.0
        %687 = vmatpush1.msra.mxu0 0.0
        %688 = vmatprep.subr.mxu0 0.0
        %689 = vmatpush1.msra.mxu0 0.0
        %690 = vmatprep.subr.mxu0 0.0
        %691 = vmatpush1.msra.mxu0 0.0
        %692 = vmatprep.subr.mxu0 0.0
        %693 = vmatpush1.msra.mxu0 0.0
        %694 = vmatprep.subr.mxu0 0.0
        %695 = vmatpush1.msra.mxu0 0.0
        %696 = vmatprep.subr.mxu0 0.0
        %697 = vmatpush1.msra.mxu0 0.0
        %698 = vmatprep.subr.mxu0 0.0
        %699 = vmatpush1.msra.mxu0 0.0
        %700 = vmatprep.subr.mxu0 0.0
        %701 = vmatpush1.msra.mxu0 0.0
        %702 = vmatprep.subr.mxu0 0.0
        %703 = vmatpush1.msra.mxu0 0.0
        %704 = vmatprep.subr.mxu0 0.0
        %705 = vmatpush1.msra.mxu0 0.0
        %706 = vmatprep.subr.mxu0 0.0
        %707 = vmatpush1.msra.mxu0 0.0
        %708 = vmatprep.subr.mxu0 0.0
        %709 = vmatpush1.msra.mxu0 0.0
        %710 = vmatprep.subr.mxu0 0.0
        %711 = vmatpush1.msra.mxu0 0.0
        %712 = vmatprep.subr.mxu0 0.0
        %713 = vmatpush1.msra.mxu0 0.0
        %714 = vmatprep.subr.mxu0 0.0
        %715 = vmatpush1.msra.mxu0 0.0
        %716 = vmatprep.subr.mxu0 0.0
        %717 = vmatpush1.msra.mxu0 0.0
        %718 = vmatprep.subr.mxu0 0.0
        %719 = vmatpush1.msra.mxu0 0.0
        %720 = vmatprep.subr.mxu0 0.0
        %721 = vmatpush1.msra.mxu0 0.0
        %722 = vmatprep.subr.mxu0 0.0
        %723 = vmatpush1.msra.mxu0 0.0
        %724 = vmatprep.subr.mxu0 0.0
        %725 = vmatpush1.msra.mxu0 0.0
        %726 = vmatprep.subr.mxu0 0.0
        %727 = vmatpush1.msra.mxu0 0.0
        %728 = vmatprep.subr.mxu0 0.0
        %729 = vmatpush1.msra.mxu0 0.0
        %730 = vmatprep.subr.mxu0 0.0
        %731 = vmatpush1.msra.mxu0 0.0
        %732 = vmatprep.subr.mxu0 0.0
        %733 = vmatpush1.msra.mxu0 0.0
        %734 = vmatprep.subr.mxu0 0.0
        %735 = vmatpush1.msra.mxu0 0.0
        %736 = vmatprep.subr.mxu0 0.0
        %737 = vmatpush1.msra.mxu0 0.0
        %738 = vmatprep.subr.mxu0 0.0
        %739 = vmatpush1.msra.mxu0 0.0
        %740 = vmatprep.subr.mxu0 0.0
        %741 = vmatpush1.msra.mxu0 0.0
        %742 = vmatprep.subr.mxu0 0.0
        %743 = vmatpush1.msra.mxu0 0.0
        %744 = vmatprep.mubr.f32.mxu0 0.0
        %745 = vmatmul.mubr.f32.gmra.mrb[0].mxu0 %v636
        %v746 = vpop.f32.mrb[0].mxu0
        %v747 = vadd.f32 0.0, %v746
        %v748 = vpop.f32.mrb[0].mxu0
        %749 = vmatprep.mubr.f32.mxu0 0.0
        %750 = vmatmul.mubr.f32.gmra.mrb[0].mxu0 %v639
        %v751 = vpop.f32.mrb[0].mxu0
        %v752 = vadd.f32 0.0, %v751
        %v753 = vpop.f32.mrb[0].mxu0
        %754 = vmatprep.mubr.f32.mxu0 0.0
        %755 = vmatmul.mubr.f32.gmra.mrb[0].mxu0 %v642
        %v756 = vpop.f32.mrb[0].mxu0
        %v757 = vadd.f32 0.0, %v756
        %v758 = vpop.f32.mrb[0].mxu0
        %759 = vmatprep.mubr.f32.mxu0 0.0
        %760 = vmatmul.mubr.f32.gmra.mrb[0].mxu0 %v645
        %v761 = vpop.f32.mrb[0].mxu0
        %v762 = vadd.f32 0.0, %v761
        %v763 = vpop.f32.mrb[0].mxu0
        %764 = vmatprep.mubr.f32.mxu0 0.0
        %765 = vmatmul.mubr.f32.gmra.mrb[0].mxu0 %v648
        %v766 = vpop.f32.mrb[0].mxu0
        %v767 = vadd.f32 0.0, %v766
        %v768 = vpop.f32.mrb[0].mxu0
        %769 = vmatprep.mubr.f32.mxu0 0.0
        %770 = vmatmul.mubr.f32.gmra.mrb[0].mxu0 %v651
        %v771 = vpop.f32.mrb[0].mxu0
        %v772 = vadd.f32 0.0, %v771
        %v773 = vpop.f32.mrb[0].mxu0
        %774 = vmatprep.mubr.f32.mxu0 0.0
        %775 = vmatmul.mubr.f32.gmra.mrb[0].mxu0 %v654
        %v776 = vpop.f32.mrb[0].mxu0
        %v777 = vadd.f32 0.0, %v776
        %v778 = vpop.f32.mrb[0].mxu0
        %779 = vmatprep.mubr.f32.mxu0 0.0
        %780 = vmatmul.mubr.f32.gmra.mrb[0].mxu0 %v657
        %v781 = vpop.f32.mrb[0].mxu0
        %v782 = vadd.f32 0.0, %v781
        %v783 = vpop.f32.mrb[0].mxu0
        %784 = vmatprep.mubr.f32.mxu0 0.0
        %785 = vmatmul.mubr.f32.gmra.mrb[0].mxu0 %v660
        %v786 = vpop.f32.mrb[0].mxu0
        %v787 = vadd.f32 0.0, %v786
        %v788 = vpop.f32.mrb[0].mxu0
        %789 = vmatprep.mubr.f32.mxu0 0.0
        %790 = vmatmul.mubr.f32.gmra.mrb[0].mxu0 %v663
        %v791 = vpop.f32.mrb[0].mxu0
        %v792 = vadd.f32 0.0, %v791
        %v793 = vpop.f32.mrb[0].mxu0
        %794 = vmatprep.mubr.f32.mxu0 0.0
        %795 = vmatmul.mubr.f32.gmra.mrb[0].mxu0 %v666
        %v796 = vpop.f32.mrb[0].mxu0
        %v797 = vadd.f32 0.0, %v796
        %v798 = vpop.f32.mrb[0].mxu0
        %799 = vmatprep.mubr.f32.mxu0 0.0
        %800 = vmatmul.mubr.f32.gmra.mrb[0].mxu0 %v669
        %v801 = vpop.f32.mrb[0].mxu0
        %v802 = vadd.f32 0.0, %v801
        %v803 = vpop.f32.mrb[0].mxu0
        %804 = vmatprep.mubr.f32.mxu0 0.0
        %805 = vmatmul.mubr.f32.gmra.mrb[0].mxu0 %v672
        %v806 = vpop.f32.mrb[0].mxu0
        %v807 = vadd.f32 0.0, %v806
        %v808 = vpop.f32.mrb[0].mxu0
        %809 = vmatprep.mubr.f32.mxu0 0.0
        %810 = vmatmul.mubr.f32.gmra.mrb[0].mxu0 %v675
        %v811 = vpop.f32.mrb[0].mxu0
        %v812 = vadd.f32 0.0, %v811
        %v813 = vpop.f32.mrb[0].mxu0
        %814 = vdwg.mxu0
        %s815 = scalar_lea.vmem %s161, 16 [#allocation2]
        %v816 = vld [vmem:[%s815] sm:$0xff]
        %v817 = vld [vmem:[%s815 + $0x8] sm:$0xff]
        %v818 = vld [vmem:[%s815 + $0x10] sm:$0xff]
        %v819 = vld [vmem:[%s815 + $0x18] sm:$0xff]
        %v820 = vld [vmem:[%s815 + $0x20] sm:$0xff]
        %v821 = vld [vmem:[%s815 + $0x28] sm:$0xff]
        %v822 = vld [vmem:[%s815 + $0x30] sm:$0xff]
        %v823 = vld [vmem:[%s815 + $0x38] sm:$0xff]
        %v824 = vld [vmem:[%s815 + $0x40] sm:$0xff]
        %v825 = vld [vmem:[%s815 + $0x48] sm:$0xff]
        %v826 = vld [vmem:[%s815 + $0x50] sm:$0xff]
        %v827 = vld [vmem:[%s815 + $0x58] sm:$0xff]
        %v828 = vld [vmem:[%s815 + $0x60] sm:$0xff]
        %v829 = vld [vmem:[%s815 + $0x68] sm:$0xff]
        %v830 = vadd.f32 %v816, %v747
        %v831 = vadd.f32 %v817, %v752
        %v832 = vadd.f32 %v818, %v757
        %v833 = vadd.f32 %v819, %v762
        %v834 = vadd.f32 %v820, %v767
        %v835 = vadd.f32 %v821, %v772
        %v836 = vadd.f32 %v822, %v777
        %v837 = vadd.f32 %v823, %v782
        %v838 = vadd.f32 %v824, %v787
        %v839 = vadd.f32 %v825, %v792
        %v840 = vadd.f32 %v826, %v797
        %v841 = vadd.f32 %v827, %v802
        %v842 = vadd.f32 %v828, %v807
        %v843 = vadd.f32 %v829, %v812
        %844 = vst [vmem:[%s815] sm:$0xff] %v830
        %845 = vst [vmem:[%s815 + $0x8] sm:$0xff] %v831
        %846 = vst [vmem:[%s815 + $0x10] sm:$0xff] %v832
        %847 = vst [vmem:[%s815 + $0x18] sm:$0xff] %v833
        %848 = vst [vmem:[%s815 + $0x20] sm:$0xff] %v834
        %849 = vst [vmem:[%s815 + $0x28] sm:$0xff] %v835
        %850 = vst [vmem:[%s815 + $0x30] sm:$0xff] %v836
        %851 = vst [vmem:[%s815 + $0x38] sm:$0xff] %v837
        %852 = vst [vmem:[%s815 + $0x40] sm:$0xff] %v838
        %853 = vst [vmem:[%s815 + $0x48] sm:$0xff] %v839
        %854 = vst [vmem:[%s815 + $0x50] sm:$0xff] %v840
        %855 = vst [vmem:[%s815 + $0x58] sm:$0xff] %v841
        %856 = vst [vmem:[%s815 + $0x60] sm:$0xff] %v842
        %857 = vst [vmem:[%s815 + $0x68] sm:$0xff] %v843
        %s858 = sand.u32 %s87, 1
        %s859 = scalar_lea.sflag [#allocation3], %s858
        %s860 = sand.u32 %s87, 1
        %s861 = smul.addr %s860, 128
        %s862 = scalar_lea.vmem [#allocation2], %s861
        // Predicated region
        $region29: #{tpu_custom_call.1} parent=27 // pred_check
          %p863 = pneg %p97
        $region30: #{tpu_custom_call.1} parent=27 // pred_check_branch
          %865 = sbr.rel (%p863) target = $region32
        $region31: #{tpu_custom_call.1} parent=27 // pred_region
          %s866 = smul.u32 2, %s21
          %s868 = ssub.s32 2048, 2048
          %869 = vsyncadd %s859, %s868
          %s870 = smul.addr %s20, 16
          %s871 = sadd.s32 %s866, %s870
          %s872 = smul.addr %s871, 128
          %s873 = scalar_lea.hbm %s2, %s872
          %s874 = sshll.u32 %s862, 4
          %s875 = int_to_ptr.vmem [resolvable:$true] %s874
          %880 = dma.vmem_to_hbm [thread:$0]  %s875, 2048, %s873, %s859, 128, 128, 8
        $region32: #{tpu_custom_call.1} parent=27 // pred_fallthru
          _
      $region28: #{tpu_custom_call.1} parent=5 // pred_fallthru
        _
      %p881 = scmp.le.s32.totalorder 2, %s11
      // Predicated region
      $region33: #{tpu_custom_call.1} parent=5 // pred_check
        %p882 = pneg %p881
      $region34: #{tpu_custom_call.1} parent=5 // pred_check_branch
        %884 = sbr.rel (%p882) target = $region36
      $region35: #{tpu_custom_call.1} parent=5 // pred_region
        %s885 = ssub.s32 %s11, 2
        // Predicated region
        $region37: #{tpu_custom_call.1} parent=35 // pred_check
          %p886 = pneg %p103
        $region38: #{tpu_custom_call.1} parent=35 // pred_check_branch
          %888 = sbr.rel (%p886) target = $region40
        $region39: #{tpu_custom_call.1} parent=35 // pred_region
          %s889 = sand.u32 %s88, 1
          %s890 = scalar_lea.sflag [#allocation3], %s889
          %s891 = sand.u32 %s88, 1
          %s892 = smul.addr %s891, 128
          %s893 = scalar_lea.vmem [#allocation2], %s892
          %894 = dma.done %s890, 2048
        $region40: #{tpu_custom_call.1} parent=35 // pred_fallthru
          _
      $region36: #{tpu_custom_call.1} parent=5 // pred_fallthru
        _
    $region6: #{tpu_custom_call.1} parent=1 // loop_footer
      %s15 = sadd.s32 1, %s11
    $region7: #{tpu_custom_call.1} parent=1 // loop_footer_branch
      %10 = sbr.rel target = $region3
    $region8: #{tpu_custom_call.1} parent=1 // loop_exit
      _
    %895 = vsyncpa [#allocation3], 1
    %s896 = scalar_lea.sflag [#allocation3], 1
    %897 = vsyncpa %s896, 1

</llo_original>
